<compile_context>
chip_gen: v7x
topology: tpu7x:2x2x1
jax: 0.10.0
libtpu: 0.0.40
codegen_flags: <defaults>
</compile_context>

<pallas_src>
import jax
import jax.numpy as jnp
import numpy as np
from jax.experimental import pallas as pl
from jax.experimental.pallas import tpu as pltpu

POOL = 4  # nn.AvgPool2d(4)


# --------------------------------------------------------------------------
# Host-side constants
# --------------------------------------------------------------------------
def _host_constants(C, H, W):
    """Constant matrices (numpy, built once on host).

    phc (HP, C*H): 0/1 gather-and-sum matrix; (phc @ x.reshape(C*H, W)) sums
        each 4-row block across all channels (exact in bf16 as well).
    pwt (W, WP): column pooling carrying the full 1/(16*C) normalisation (f32).
    dl, dr (WP, WP): (d @ dl)[i,j] = d[i,j]-d[i,j-1]; (d @ dr) = d - right nb.
    du, dd (HP, HP): (du @ d)[i,j] = d[i,j]-d[i-1,j]; (dd @ d) = d - down nb.
    Missing neighbours contribute 0, matching F.conv2d(padding=1).
    """
    HP, WP = H // POOL, W // POOL
    phc = np.zeros((HP, C * H), np.float32)
    h = np.arange(H)
    for c in range(C):
        phc[h // POOL, c * H + h] = 1.0
    pwt = np.zeros((W, WP), np.float32)
    pwt[np.arange(W), np.arange(W) // POOL] = 1.0 / (POOL * POOL * C)
    eye_w = np.eye(WP, dtype=np.float32)
    eye_h = np.eye(HP, dtype=np.float32)
    dl = eye_w - np.eye(WP, k=1, dtype=np.float32)
    dr = eye_w - np.eye(WP, k=-1, dtype=np.float32)
    du = eye_h - np.eye(HP, k=-1, dtype=np.float32)
    dd = eye_h - np.eye(HP, k=1, dtype=np.float32)
    return phc, pwt, dl, dr, du, dd


# --------------------------------------------------------------------------
# Kernel
# --------------------------------------------------------------------------
def l_spa_kernel(phc_ref, pwt_ref, dl_ref, dr_ref, du_ref, dd_ref,
                 org_ref, enh_ref, out_ref):
    bt = org_ref.shape[0]
    phc = phc_ref[...]      # (HP, C*H), input dtype (0/1 entries -> exact)
    pwt = pwt_ref[...]      # (W, WP),   f32 (carries 1/(16*C))
    dl = dl_ref[...]
    dr = dr_ref[...]
    du = du_ref[...]
    dd = dd_ref[...]

    def body(i, carry):
        # org_ref/enh_ref blocks are (bt, C*H, W); dynamic leading-axis index.
        po = jnp.dot(phc, org_ref[i], preferred_element_type=jnp.float32)   # (HP, W)
        pe = jnp.dot(phc, enh_ref[i], preferred_element_type=jnp.float32)   # (HP, W)
        # pooled channel-mean difference: pool(mean_c(org)) - pool(mean_c(enh))
        d = jnp.dot(po - pe, pwt, preferred_element_type=jnp.float32)       # (HP, WP)
        # Directional first differences (zero-padded boundary) as (I - shift) matmuls.
        el = jnp.dot(d, dl, preferred_element_type=jnp.float32)
        er = jnp.dot(d, dr, preferred_element_type=jnp.float32)
        eu = jnp.dot(du, d, preferred_element_type=jnp.float32)
        ed = jnp.dot(dd, d, preferred_element_type=jnp.float32)
        out_ref[i] = (el * el + er * er + eu * eu + ed * ed).astype(out_ref.dtype)
        return carry

    jax.lax.fori_loop(0, bt, body, 0, unroll=True)


# --------------------------------------------------------------------------
# Sizing helpers
# --------------------------------------------------------------------------
def _vmem_capacity_bytes():
    try:
        return int(pltpu.get_tpu_info().vmem_capacity_bytes)
    except Exception:
        return 64 << 20  # v7x worst case


def _is_multi_tensorcore():
    """True on chips whose 'parallel' grid axis shards across >1 TensorCore."""
    try:
        kind = jax.devices()[0].device_kind.lower()
    except Exception:
        return True  # conservative: keep >=2 grid steps
    single_tc_tags = ("v2", "v3", "v5e", "v5 lite", "v5lite", "v6e", "v6 lite", "v6lite")
    return not any(t in kind for t in single_tc_tags)


def _footprint_bytes(bt, C, H, W, in_itemsize):
    """Estimated VMEM footprint for a batch tile of size bt."""
    HP, WP = H // POOL, W // POOL
    # constants counted at 2 buffers (safe even if single-buffering is unavailable)
    const_bytes = 2 * 4 * (HP * C * H + W * WP + 2 * WP * WP + 2 * HP * HP)
    in_blocks = 2 * 2 * bt * C * H * W * in_itemsize   # org + enh, double-buffered
    out_blocks = 2 * bt * HP * WP * 4                  # double-buffered output
    temps = 4 * HP * W * 4 + 16 * HP * WP * 4          # per-image f32 live temporaries
    margin = 2 << 20                                   # compiler-internal scratch
    return const_bytes + in_blocks + out_blocks + temps + margin


def _choose_bt(B, C, H, W, in_itemsize, budget, multi_tc):
    candidates = [c for c in range(1, B + 1)
                  if B % c == 0 and _footprint_bytes(c, C, H, W, in_itemsize) <= budget]
    if not candidates:
        return 1
    if multi_tc and B > 1:
        # prefer an even number of grid steps (balanced across 2 TensorCores)
        even = [c for c in candidates if (B // c) >= 2 and (B // c) % 2 == 0]
        if even:
            return max(even)
        multi = [c for c in candidates if (B // c) >= 2]
        if multi:
            return max(multi)
    return max(candidates)


# --------------------------------------------------------------------------
# Wrapper
# --------------------------------------------------------------------------
def l_spa(org, enhance, *, bt=None):
    B, C, H, W = org.shape
    if H % POOL or W % POOL:
        # PyTorch AvgPool2d(4) floors and drops the remainder; we require exact tiling.
        raise ValueError("L_spa Pallas kernel requires H and W to be multiples of 4.")
    HP, WP = H // POOL, W // POOL
    in_dtype = org.dtype
    itemsize = np.dtype(in_dtype).itemsize

    vmem_cap = _vmem_capacity_bytes()
    # ~38 MiB on v7x (64 MiB physical), 48 MiB on v5e/v6e (128 MiB physical).
    budget = min(int(vmem_cap * 0.6), 48 << 20)
    multi_tc = _is_multi_tensorcore()
    if bt is None:
        bt = _choose_bt(B, C, H, W, itemsize, budget, multi_tc)
    assert B % bt == 0
    vmem_limit = int(min(vmem_cap,
                         max(budget, _footprint_bytes(bt, C, H, W, itemsize) + (8 << 20))))

    phc_np, pwt_np, dl_np, dr_np, du_np, dd_np = _host_constants(C, H, W)
    consts = (
        jnp.asarray(phc_np, dtype=in_dtype),   # 0/1 entries: exact in bf16 too
        jnp.asarray(pwt_np),                   # f32, carries 1/(16*C)
        jnp.asarray(dl_np), jnp.asarray(dr_np),
        jnp.asarray(du_np), jnp.asarray(dd_np),
    )
    # Layout-free flatten (B, C, H, W) -> (B, C*H, W); kernel never reshapes.
    org_r = org.reshape(B, C * H, W)
    enh_r = enhance.reshape(B, C * H, W)

    def build(single_buffer_consts):
        const_kwargs = {"pipeline_mode": pl.Buffered(1)} if single_buffer_consts else {}

        def cspec(shape):
            # Block index never changes across grid steps -> DMA'd once, resident.
            return pl.BlockSpec(shape, lambda b: (0, 0), **const_kwargs)

        return pl.pallas_call(
            l_spa_kernel,
            out_shape=jax.ShapeDtypeStruct((B, HP, WP), jnp.float32),
            grid=(B // bt,),
            in_specs=[
                cspec((HP, C * H)),   # phc
                cspec((W, WP)),       # pwt
                cspec((WP, WP)),      # dl
                cspec((WP, WP)),      # dr
                cspec((HP, HP)),      # du
                cspec((HP, HP)),      # dd
                pl.BlockSpec((bt, C * H, W), lambda b: (b, 0, 0)),
                pl.BlockSpec((bt, C * H, W), lambda b: (b, 0, 0)),
            ],
            out_specs=pl.BlockSpec((bt, HP, WP), lambda b: (b, 0, 0)),
            compiler_params=pltpu.CompilerParams(
                dimension_semantics=("parallel",),
                vmem_limit_bytes=vmem_limit),
        )

    args = (*consts, org_r, enh_r)
    try:
        out = build(single_buffer_consts=True)(*args)
    except Exception:
        # Fallback if single-buffered (pl.Buffered(1)) constant inputs are not
        # supported by this JAX/Mosaic version: use default double-buffering
        # (already accounted for in the VMEM budget).
        out = build(single_buffer_consts=False)(*args)
    return out.reshape(B, 1, HP, WP)


# --------------------------------------------------------------------------
# Pure-JAX reference (mirrors the PyTorch forward's returned value)
# --------------------------------------------------------------------------
def ref_l_spa(org, enh):
    org_mean = jnp.mean(org, axis=1, keepdims=True)
    enh_mean = jnp.mean(enh, axis=1, keepdims=True)

    def pool(x):
        B, _, H, W = x.shape
        return x.reshape(B, 1, H // POOL, POOL, W // POOL, POOL).mean(axis=(3, 5))

    op, ep = pool(org_mean), pool(enh_mean)

    def grads(x):
        xp = jnp.pad(x, ((0, 0), (0, 0), (1, 1), (1, 1)))
        left = x - xp[:, :, 1:-1, :-2]
        right = x - xp[:, :, 1:-1, 2:]
        up = x - xp[:, :, :-2, 1:-1]
        down = x - xp[:, :, 2:, 1:-1]
        return left, right, up, down

    go, ge = grads(op), grads(ep)
    return sum((a - b) ** 2 for a, b in zip(go, ge))


if __name__ == "__main__":
    key = jax.random.PRNGKey(0)
    k1, k2, k3, k4 = jax.random.split(key, 4)

    # Case 1: f32, B=2, C=4, 16x16
    B, C, H, W = 2, 4, 16, 16
    org = jax.random.uniform(k1, (B, C, H, W), dtype=jnp.float32)
    enhance = jax.random.uniform(k2, (B, C, H, W), dtype=jnp.float32)
    out = jax.block_until_ready(l_spa(org, enhance))
    assert out.shape == (B, 1, H // POOL, W // POOL)
    np.testing.assert_allclose(np.asarray(out), np.asarray(ref_l_spa(org, enhance)),
                               rtol=1e-4, atol=1e-5)

    # Case 2: f32, B=4, C=3 (multi-image block per grid step on single-TC chips)
    B2, C2, H2, W2 = 4, 3, 16, 16
    org2 = jax.random.uniform(k3, (B2, C2, H2, W2), dtype=jnp.float32)
    enh2 = jax.random.uniform(k4, (B2, C2, H2, W2), dtype=jnp.float32)
    out2 = jax.block_until_ready(l_spa(org2, enh2))
    assert out2.shape == (B2, 1, H2 // POOL, W2 // POOL)
    np.testing.assert_allclose(np.asarray(out2), np.asarray(ref_l_spa(org2, enh2)),
                               rtol=1e-4, atol=1e-5)

    # Case 3: bf16 primary fast path (halves HBM traffic; f32 accumulation in-kernel)
    org3 = org.astype(jnp.bfloat16)
    enh3 = enhance.astype(jnp.bfloat16)
    out3 = jax.block_until_ready(l_spa(org3, enh3))
    ref3 = ref_l_spa(org3.astype(jnp.float32), enh3.astype(jnp.float32))
    np.testing.assert_allclose(np.asarray(out3), np.asarray(ref3), rtol=5e-2, atol=1e-2)

    print("KERNEL_OK")
</pallas_src>

<mosaic_0001>
module attributes {stable_mosaic.version = 11 : i64} {
  func.func @l_spa_kernel(%arg0: i32, %arg1: memref<4x64xf32, #tpu.memory_space<vmem>>, %arg2: memref<16x4xf32, #tpu.memory_space<vmem>>, %arg3: memref<4x4xf32, #tpu.memory_space<vmem>>, %arg4: memref<4x4xf32, #tpu.memory_space<vmem>>, %arg5: memref<4x4xf32, #tpu.memory_space<vmem>>, %arg6: memref<4x4xf32, #tpu.memory_space<vmem>>, %arg7: memref<1x64x16xf32, #tpu.memory_space<vmem>>, %arg8: memref<1x64x16xf32, #tpu.memory_space<vmem>>, %arg9: memref<1x4x4xf32, #tpu.memory_space<vmem>>) attributes {dimension_semantics = [#tpu.dimension_semantics<parallel>], iteration_bounds = array<i64: 2>, scalar_prefetch = 0 : i64, scratch_operands = 0 : i64, tpu.core_type = #tpu.core_type<tc>, window_params = [{pipeline_mode = #tpu.pipeline_mode<synchronous>, transform_indices = @transform_0, window_bounds = array<i64: 4, 64>}, {pipeline_mode = #tpu.pipeline_mode<synchronous>, transform_indices = @transform_1, window_bounds = array<i64: 16, 4>}, {pipeline_mode = #tpu.pipeline_mode<synchronous>, transform_indices = @transform_2, window_bounds = array<i64: 4, 4>}, {pipeline_mode = #tpu.pipeline_mode<synchronous>, transform_indices = @transform_3, window_bounds = array<i64: 4, 4>}, {pipeline_mode = #tpu.pipeline_mode<synchronous>, transform_indices = @transform_4, window_bounds = array<i64: 4, 4>}, {pipeline_mode = #tpu.pipeline_mode<synchronous>, transform_indices = @transform_5, window_bounds = array<i64: 4, 4>}, {transform_indices = @transform_6, window_bounds = array<i64: 1, 64, 16>}, {transform_indices = @transform_7, window_bounds = array<i64: 1, 64, 16>}, {transform_indices = @transform_8, window_bounds = array<i64: 1, 4, 4>}]} {
    %c0 = arith.constant 0 : index
    %c0_0 = arith.constant 0 : index
    %0 = vector.load %arg1[%c0, %c0_0] : memref<4x64xf32, #tpu.memory_space<vmem>>, vector<4x64xf32>
    %c0_1 = arith.constant 0 : index
    %c0_2 = arith.constant 0 : index
    %1 = vector.load %arg2[%c0_1, %c0_2] : memref<16x4xf32, #tpu.memory_space<vmem>>, vector<16x4xf32>
    %c0_3 = arith.constant 0 : index
    %c0_4 = arith.constant 0 : index
    %2 = vector.load %arg3[%c0_3, %c0_4] : memref<4x4xf32, #tpu.memory_space<vmem>>, vector<4x4xf32>
    %c0_5 = arith.constant 0 : index
    %c0_6 = arith.constant 0 : index
    %3 = vector.load %arg4[%c0_5, %c0_6] : memref<4x4xf32, #tpu.memory_space<vmem>>, vector<4x4xf32>
    %c0_7 = arith.constant 0 : index
    %c0_8 = arith.constant 0 : index
    %4 = vector.load %arg5[%c0_7, %c0_8] : memref<4x4xf32, #tpu.memory_space<vmem>>, vector<4x4xf32>
    %c0_9 = arith.constant 0 : index
    %c0_10 = arith.constant 0 : index
    %5 = vector.load %arg6[%c0_9, %c0_10] : memref<4x4xf32, #tpu.memory_space<vmem>>, vector<4x4xf32>
    %c0_i32 = arith.constant 0 : i32
    %6 = arith.index_cast %c0_i32 : i32 to index
    %c0_11 = arith.constant 0 : index
    %c0_12 = arith.constant 0 : index
    %7 = vector.load %arg7[%6, %c0_11, %c0_12] : memref<1x64x16xf32, #tpu.memory_space<vmem>>, vector<1x64x16xf32>
    %8 = vector.shape_cast %7 : vector<1x64x16xf32> to vector<64x16xf32>
    %cst = arith.constant dense<0.000000e+00> : vector<4x16xf32>
    %9 = tpu.matmul %0, %8, %cst {dimension_numbers = #tpu.dot_dimension_numbers<[1], [0], [0], [1], [0, 0, 1, 1], [], []>} : vector<4x64xf32>, vector<64x16xf32>, vector<4x16xf32> -> vector<4x16xf32>
    %10 = arith.index_cast %c0_i32 : i32 to index
    %c0_13 = arith.constant 0 : index
    %c0_14 = arith.constant 0 : index
    %11 = vector.load %arg8[%10, %c0_13, %c0_14] : memref<1x64x16xf32, #tpu.memory_space<vmem>>, vector<1x64x16xf32>
    %12 = vector.shape_cast %11 : vector<1x64x16xf32> to vector<64x16xf32>
    %cst_15 = arith.constant dense<0.000000e+00> : vector<4x16xf32>
    %13 = tpu.matmul %0, %12, %cst_15 {dimension_numbers = #tpu.dot_dimension_numbers<[1], [0], [0], [1], [0, 0, 1, 1], [], []>} : vector<4x64xf32>, vector<64x16xf32>, vector<4x16xf32> -> vector<4x16xf32>
    %14 = arith.subf %9, %13 : vector<4x16xf32>
    %cst_16 = arith.constant dense<0.000000e+00> : vector<4x4xf32>
    %15 = tpu.matmul %14, %1, %cst_16 {dimension_numbers = #tpu.dot_dimension_numbers<[1], [0], [0], [1], [0, 0, 1, 1], [], []>} : vector<4x16xf32>, vector<16x4xf32>, vector<4x4xf32> -> vector<4x4xf32>
    %cst_17 = arith.constant dense<0.000000e+00> : vector<4x4xf32>
    %16 = tpu.matmul %15, %2, %cst_17 {dimension_numbers = #tpu.dot_dimension_numbers<[1], [0], [0], [1], [0, 0, 1, 1], [], []>} : vector<4x4xf32>, vector<4x4xf32>, vector<4x4xf32> -> vector<4x4xf32>
    %cst_18 = arith.constant dense<0.000000e+00> : vector<4x4xf32>
    %17 = tpu.matmul %15, %3, %cst_18 {dimension_numbers = #tpu.dot_dimension_numbers<[1], [0], [0], [1], [0, 0, 1, 1], [], []>} : vector<4x4xf32>, vector<4x4xf32>, vector<4x4xf32> -> vector<4x4xf32>
    %cst_19 = arith.constant dense<0.000000e+00> : vector<4x4xf32>
    %18 = tpu.matmul %4, %15, %cst_19 {dimension_numbers = #tpu.dot_dimension_numbers<[1], [0], [0], [1], [0, 0, 1, 1], [], []>} : vector<4x4xf32>, vector<4x4xf32>, vector<4x4xf32> -> vector<4x4xf32>
    %cst_20 = arith.constant dense<0.000000e+00> : vector<4x4xf32>
    %19 = tpu.matmul %5, %15, %cst_20 {dimension_numbers = #tpu.dot_dimension_numbers<[1], [0], [0], [1], [0, 0, 1, 1], [], []>} : vector<4x4xf32>, vector<4x4xf32>, vector<4x4xf32> -> vector<4x4xf32>
    %20 = arith.mulf %16, %16 : vector<4x4xf32>
    %21 = arith.mulf %17, %17 : vector<4x4xf32>
    %22 = arith.addf %20, %21 : vector<4x4xf32>
    %23 = arith.mulf %18, %18 : vector<4x4xf32>
    %24 = arith.addf %22, %23 : vector<4x4xf32>
    %25 = arith.mulf %19, %19 : vector<4x4xf32>
    %26 = arith.addf %24, %25 : vector<4x4xf32>
    %27 = arith.index_cast %c0_i32 : i32 to index
    %c0_21 = arith.constant 0 : index
    %c0_22 = arith.constant 0 : index
    %28 = vector.load %arg9[%27, %c0_21, %c0_22] : memref<1x4x4xf32, #tpu.memory_space<vmem>>, vector<1x4x4xf32>
    %29 = vector.shape_cast %28 : vector<1x4x4xf32> to vector<4x4xf32>
    %30 = vector.shape_cast %26 : vector<4x4xf32> to vector<1x4x4xf32>
    tpu.vector_store %arg9[%27, %c0_21, %c0_22], %30 {strides = array<i32>} : memref<1x4x4xf32, #tpu.memory_space<vmem>>, vector<1x4x4xf32>,
    %c1_i32 = arith.constant 1 : i32
    return
  }
  func.func @transform_0(%arg0: i32) -> (i32, i32) {
    %c0_i32 = arith.constant 0 : i32
    %c0_i32_0 = arith.constant 0 : i32
    %c0_i32_1 = arith.constant 0 : i32
    return %c0_i32, %c0_i32_0 : i32, i32
  }
  func.func @transform_1(%arg0: i32) -> (i32, i32) {
    %c0_i32 = arith.constant 0 : i32
    %c0_i32_0 = arith.constant 0 : i32
    %c0_i32_1 = arith.constant 0 : i32
    return %c0_i32, %c0_i32_0 : i32, i32
  }
  func.func @transform_2(%arg0: i32) -> (i32, i32) {
    %c0_i32 = arith.constant 0 : i32
    %c0_i32_0 = arith.constant 0 : i32
    %c0_i32_1 = arith.constant 0 : i32
    return %c0_i32, %c0_i32_0 : i32, i32
  }
  func.func @transform_3(%arg0: i32) -> (i32, i32) {
    %c0_i32 = arith.constant 0 : i32
    %c0_i32_0 = arith.constant 0 : i32
    %c0_i32_1 = arith.constant 0 : i32
    return %c0_i32, %c0_i32_0 : i32, i32
  }
  func.func @transform_4(%arg0: i32) -> (i32, i32) {
    %c0_i32 = arith.constant 0 : i32
    %c0_i32_0 = arith.constant 0 : i32
    %c0_i32_1 = arith.constant 0 : i32
    return %c0_i32, %c0_i32_0 : i32, i32
  }
  func.func @transform_5(%arg0: i32) -> (i32, i32) {
    %c0_i32 = arith.constant 0 : i32
    %c0_i32_0 = arith.constant 0 : i32
    %c0_i32_1 = arith.constant 0 : i32
    return %c0_i32, %c0_i32_0 : i32, i32
  }
  func.func @transform_6(%arg0: i32) -> (i32, i32, i32) {
    %c0_i32 = arith.constant 0 : i32
    %c0_i32_0 = arith.constant 0 : i32
    %c0_i32_1 = arith.constant 0 : i32
    return %arg0, %c0_i32, %c0_i32_0 : i32, i32, i32
  }
  func.func @transform_7(%arg0: i32) -> (i32, i32, i32) {
    %c0_i32 = arith.constant 0 : i32
    %c0_i32_0 = arith.constant 0 : i32
    %c0_i32_1 = arith.constant 0 : i32
    return %arg0, %c0_i32, %c0_i32_0 : i32, i32, i32
  }
  func.func @transform_8(%arg0: i32) -> (i32, i32, i32) {
    %c0_i32 = arith.constant 0 : i32
    %c0_i32_0 = arith.constant 0 : i32
    %c0_i32_1 = arith.constant 0 : i32
    return %arg0, %c0_i32, %c0_i32_0 : i32, i32, i32
  }
}

module attributes {stable_mosaic.version = 11 : i64} {
  func.func @l_spa_kernel(%arg0: i32, %arg1: memref<4x64xf32, #tpu.memory_space<vmem>>, %arg2: memref<16x4xf32, #tpu.memory_space<vmem>>, %arg3: memref<4x4xf32, #tpu.memory_space<vmem>>, %arg4: memref<4x4xf32, #tpu.memory_space<vmem>>, %arg5: memref<4x4xf32, #tpu.memory_space<vmem>>, %arg6: memref<4x4xf32, #tpu.memory_space<vmem>>, %arg7: memref<1x64x16xf32, #tpu.memory_space<vmem>>, %arg8: memref<1x64x16xf32, #tpu.memory_space<vmem>>, %arg9: memref<1x4x4xf32, #tpu.memory_space<vmem>>) attributes {dimension_semantics = [#tpu.dimension_semantics<parallel>], iteration_bounds = array<i64: 2>, scalar_prefetch = 0 : i64, scratch_operands = 0 : i64, tpu.core_type = #tpu.core_type<tc>, window_params = [{pipeline_mode = #tpu.pipeline_mode<synchronous>, transform_indices = @transform_0, window_bounds = array<i64: 4, 64>}, {pipeline_mode = #tpu.pipeline_mode<synchronous>, transform_indices = @transform_1, window_bounds = array<i64: 16, 4>}, {pipeline_mode = #tpu.pipeline_mode<synchronous>, transform_indices = @transform_2, window_bounds = array<i64: 4, 4>}, {pipeline_mode = #tpu.pipeline_mode<synchronous>, transform_indices = @transform_3, window_bounds = array<i64: 4, 4>}, {pipeline_mode = #tpu.pipeline_mode<synchronous>, transform_indices = @transform_4, window_bounds = array<i64: 4, 4>}, {pipeline_mode = #tpu.pipeline_mode<synchronous>, transform_indices = @transform_5, window_bounds = array<i64: 4, 4>}, {transform_indices = @transform_6, window_bounds = array<i64: 1, 64, 16>}, {transform_indices = @transform_7, window_bounds = array<i64: 1, 64, 16>}, {transform_indices = @transform_8, window_bounds = array<i64: 1, 4, 4>}]} {
    %c0 = arith.constant 0 : index
    %c0_0 = arith.constant 0 : index
    %0 = vector.load %arg1[%c0, %c0_0] : memref<4x64xf32, #tpu.memory_space<vmem>>, vector<4x64xf32>
    %c0_1 = arith.constant 0 : index
    %c0_2 = arith.constant 0 : index
    %1 = vector.load %arg2[%c0_1, %c0_2] : memref<16x4xf32, #tpu.memory_space<vmem>>, vector<16x4xf32>
    %c0_3 = arith.constant 0 : index
    %c0_4 = arith.constant 0 : index
    %2 = vector.load %arg3[%c0_3, %c0_4] : memref<4x4xf32, #tpu.memory_space<vmem>>, vector<4x4xf32>
    %c0_5 = arith.constant 0 : index
    %c0_6 = arith.constant 0 : index
    %3 = vector.load %arg4[%c0_5, %c0_6] : memref<4x4xf32, #tpu.memory_space<vmem>>, vector<4x4xf32>
    %c0_7 = arith.constant 0 : index
    %c0_8 = arith.constant 0 : index
    %4 = vector.load %arg5[%c0_7, %c0_8] : memref<4x4xf32, #tpu.memory_space<vmem>>, vector<4x4xf32>
    %c0_9 = arith.constant 0 : index
    %c0_10 = arith.constant 0 : index
    %5 = vector.load %arg6[%c0_9, %c0_10] : memref<4x4xf32, #tpu.memory_space<vmem>>, vector<4x4xf32>
    %c0_i32 = arith.constant 0 : i32
    %6 = arith.index_cast %c0_i32 : i32 to index
    %c0_11 = arith.constant 0 : index
    %c0_12 = arith.constant 0 : index
    %7 = vector.load %arg7[%6, %c0_11, %c0_12] : memref<1x64x16xf32, #tpu.memory_space<vmem>>, vector<1x64x16xf32>
    %8 = vector.shape_cast %7 : vector<1x64x16xf32> to vector<64x16xf32>
    %cst = arith.constant dense<0.000000e+00> : vector<4x16xf32>
    %9 = tpu.matmul %0, %8, %cst {dimension_numbers = #tpu.dot_dimension_numbers<[1], [0], [0], [1], [0, 0, 1, 1], [], []>} : vector<4x64xf32>, vector<64x16xf32>, vector<4x16xf32> -> vector<4x16xf32>
    %10 = arith.index_cast %c0_i32 : i32 to index
    %c0_13 = arith.constant 0 : index
    %c0_14 = arith.constant 0 : index
    %11 = vector.load %arg8[%10, %c0_13, %c0_14] : memref<1x64x16xf32, #tpu.memory_space<vmem>>, vector<1x64x16xf32>
    %12 = vector.shape_cast %11 : vector<1x64x16xf32> to vector<64x16xf32>
    %cst_15 = arith.constant dense<0.000000e+00> : vector<4x16xf32>
    %13 = tpu.matmul %0, %12, %cst_15 {dimension_numbers = #tpu.dot_dimension_numbers<[1], [0], [0], [1], [0, 0, 1, 1], [], []>} : vector<4x64xf32>, vector<64x16xf32>, vector<4x16xf32> -> vector<4x16xf32>
    %14 = arith.subf %9, %13 : vector<4x16xf32>
    %cst_16 = arith.constant dense<0.000000e+00> : vector<4x4xf32>
    %15 = tpu.matmul %14, %1, %cst_16 {dimension_numbers = #tpu.dot_dimension_numbers<[1], [0], [0], [1], [0, 0, 1, 1], [], []>} : vector<4x16xf32>, vector<16x4xf32>, vector<4x4xf32> -> vector<4x4xf32>
    %cst_17 = arith.constant dense<0.000000e+00> : vector<4x4xf32>
    %16 = tpu.matmul %15, %2, %cst_17 {dimension_numbers = #tpu.dot_dimension_numbers<[1], [0], [0], [1], [0, 0, 1, 1], [], []>} : vector<4x4xf32>, vector<4x4xf32>, vector<4x4xf32> -> vector<4x4xf32>
    %cst_18 = arith.constant dense<0.000000e+00> : vector<4x4xf32>
    %17 = tpu.matmul %15, %3, %cst_18 {dimension_numbers = #tpu.dot_dimension_numbers<[1], [0], [0], [1], [0, 0, 1, 1], [], []>} : vector<4x4xf32>, vector<4x4xf32>, vector<4x4xf32> -> vector<4x4xf32>
    %cst_19 = arith.constant dense<0.000000e+00> : vector<4x4xf32>
    %18 = tpu.matmul %4, %15, %cst_19 {dimension_numbers = #tpu.dot_dimension_numbers<[1], [0], [0], [1], [0, 0, 1, 1], [], []>} : vector<4x4xf32>, vector<4x4xf32>, vector<4x4xf32> -> vector<4x4xf32>
    %cst_20 = arith.constant dense<0.000000e+00> : vector<4x4xf32>
    %19 = tpu.matmul %5, %15, %cst_20 {dimension_numbers = #tpu.dot_dimension_numbers<[1], [0], [0], [1], [0, 0, 1, 1], [], []>} : vector<4x4xf32>, vector<4x4xf32>, vector<4x4xf32> -> vector<4x4xf32>
    %20 = arith.mulf %16, %16 : vector<4x4xf32>
    %21 = arith.mulf %17, %17 : vector<4x4xf32>
    %22 = arith.addf %20, %21 : vector<4x4xf32>
    %23 = arith.mulf %18, %18 : vector<4x4xf32>
    %24 = arith.addf %22, %23 : vector<4x4xf32>
    %25 = arith.mulf %19, %19 : vector<4x4xf32>
    %26 = arith.addf %24, %25 : vector<4x4xf32>
    %27 = arith.index_cast %c0_i32 : i32 to index
    %c0_21 = arith.constant 0 : index
    %c0_22 = arith.constant 0 : index
    %28 = vector.load %arg9[%27, %c0_21, %c0_22] : memref<1x4x4xf32, #tpu.memory_space<vmem>>, vector<1x4x4xf32>
    %29 = vector.shape_cast %28 : vector<1x4x4xf32> to vector<4x4xf32>
    %30 = vector.shape_cast %26 : vector<4x4xf32> to vector<1x4x4xf32>
    tpu.vector_store %arg9[%27, %c0_21, %c0_22], %30 {strides = array<i32>} : memref<1x4x4xf32, #tpu.memory_space<vmem>>, vector<1x4x4xf32>,
    %c1_i32 = arith.constant 1 : i32
    return
  }
  func.func @transform_0(%arg0: i32) -> (i32, i32) {
    %c0_i32 = arith.constant 0 : i32
    %c0_i32_0 = arith.constant 0 : i32
    %c0_i32_1 = arith.constant 0 : i32
    return %c0_i32, %c0_i32_0 : i32, i32
  }
  func.func @transform_1(%arg0: i32) -> (i32, i32) {
    %c0_i32 = arith.constant 0 : i32
    %c0_i32_0 = arith.constant 0 : i32
    %c0_i32_1 = arith.constant 0 : i32
    return %c0_i32, %c0_i32_0 : i32, i32
  }
  func.func @transform_2(%arg0: i32) -> (i32, i32) {
    %c0_i32 = arith.constant 0 : i32
    %c0_i32_0 = arith.constant 0 : i32
    %c0_i32_1 = arith.constant 0 : i32
    return %c0_i32, %c0_i32_0 : i32, i32
  }
  func.func @transform_3(%arg0: i32) -> (i32, i32) {
    %c0_i32 = arith.constant 0 : i32
    %c0_i32_0 = arith.constant 0 : i32
    %c0_i32_1 = arith.constant 0 : i32
    return %c0_i32, %c0_i32_0 : i32, i32
  }
  func.func @transform_4(%arg0: i32) -> (i32, i32) {
    %c0_i32 = arith.constant 0 : i32
    %c0_i32_0 = arith.constant 0 : i32
    %c0_i32_1 = arith.constant 0 : i32
    return %c0_i32, %c0_i32_0 : i32, i32
  }
  func.func @transform_5(%arg0: i32) -> (i32, i32) {
    %c0_i32 = arith.constant 0 : i32
    %c0_i32_0 = arith.constant 0 : i32
    %c0_i32_1 = arith.constant 0 : i32
    return %c0_i32, %c0_i32_0 : i32, i32
  }
  func.func @transform_6(%arg0: i32) -> (i32, i32, i32) {
    %c0_i32 = arith.constant 0 : i32
    %c0_i32_0 = arith.constant 0 : i32
    %c0_i32_1 = arith.constant 0 : i32
    return %arg0, %c0_i32, %c0_i32_0 : i32, i32, i32
  }
  func.func @transform_7(%arg0: i32) -> (i32, i32, i32) {
    %c0_i32 = arith.constant 0 : i32
    %c0_i32_0 = arith.constant 0 : i32
    %c0_i32_1 = arith.constant 0 : i32
    return %arg0, %c0_i32, %c0_i32_0 : i32, i32, i32
  }
  func.func @transform_8(%arg0: i32) -> (i32, i32, i32) {
    %c0_i32 = arith.constant 0 : i32
    %c0_i32_0 = arith.constant 0 : i32
    %c0_i32_1 = arith.constant 0 : i32
    return %arg0, %c0_i32, %c0_i32_0 : i32, i32, i32
  }
}

</mosaic_0001>

<llo_original>
// kernel: tpu_custom_call.1
$region0: #{tpu_custom_call.1}
  #allocation0 [shape = 'u32[]', space=smem, size = 0x4, offset = 0x4, fixed_abs, tag = 'smem constant byte address 0x4 - core index']
  #allocation1 [shape = 'u32[144,128]{1,0:T(1,128)}', space=vmem, size = 0x12000, scoped, tag = 'internal scratch']
  %s0 = inlined_call_operand.vmem [shape: f32[4,64], index: 0, kind: input, shape index: {}]
  %s1 = inlined_call_operand.vmem [shape: f32[16,4], index: 1, kind: input, shape index: {}]
  %s2 = inlined_call_operand.vmem [shape: f32[4,4], index: 2, kind: input, shape index: {}]
  %s3 = inlined_call_operand.vmem [shape: f32[4,4], index: 3, kind: input, shape index: {}]
  %s4 = inlined_call_operand.vmem [shape: f32[4,4], index: 4, kind: input, shape index: {}]
  %s5 = inlined_call_operand.vmem [shape: f32[4,4], index: 5, kind: input, shape index: {}]
  %s6 = inlined_call_operand.vmem [shape: f32[2,64,16], index: 6, kind: input, shape index: {}]
  %s7 = inlined_call_operand.vmem [shape: f32[2,64,16], index: 7, kind: input, shape index: {}]
  %s8 = inlined_call_operand.hbm [shape: f32[2,4,4], index: 8, kind: output, shape index: {}]
  %s9 = sld [smem:[#allocation0]]
  $region65: #{tpu_custom_call.1} parent=0
    _
  %s11 = ssub.s32 1, %s9
  %s12 = scalar_select 0, %s11, %s9
  $region1: #{tpu_custom_call.1} parent=0
    #allocation2 [shape = 'u8[4096]{0}', space=vmem, size = 0x1000, scoped, tag = 'output window, operand 0']
    #allocation3 [shape = 's32[2]{0}', space=sflag, size = 0x8, scoped, tag = 'scoped memory for tpu_custom_call.1']
    %13 = vsyncpa [#allocation3], 0
    %s14 = scalar_lea.sflag [#allocation3], 1
    %15 = vsyncpa %s14, 0
    loop: start=0, step=1, limit=4
    $region2: #{tpu_custom_call.1} parent=1 // loop_pre_header
      _
    $region3: #{tpu_custom_call.1} parent=1 // loop_header
      %s17 = sphi 0, %s21
      %p18 = scmp.ge.s32.totalorder %s17, 4
      %s25 = sphi 0, %s25
      %s27 = sphi 0, %s25
      %s28 = sphi 0, %s27
      %s42 = sphi 0, %s28
      %s46 = sphi 0, %s46
      %s48 = sphi 0, %s46
      %s49 = sphi 0, %s48
      %s63 = sphi 0, %s49
      %s67 = sphi 0, %s67
      %s69 = sphi 0, %s67
      %s70 = sphi 0, %s69
      %s84 = sphi 0, %s70
      %s88 = sphi 0, %s88
      %s90 = sphi 0, %s88
      %s91 = sphi 0, %s90
      %s105 = sphi 0, %s91
      %s109 = sphi 0, %s109
      %s111 = sphi 0, %s109
      %s112 = sphi 0, %s111
      %s126 = sphi 0, %s112
      %s130 = sphi 0, %s130
      %s132 = sphi 0, %s130
      %s133 = sphi 0, %s132
      %s147 = sphi 0, %s133
      %s153 = sphi 0, %s155
      %s156 = sphi 0, %s153
      %s157 = sphi 0, %s156
      %s173 = sphi 0, %s157
      %s179 = sphi 0, %s181
      %s182 = sphi 0, %s179
      %s183 = sphi 0, %s182
      %s199 = sphi 0, %s183
      %s205 = sphi 0, %s207
      %s208 = sphi 0, %s205
      %s209 = sphi 0, %s208
      %s225 = sphi 0, %s209
    $region4: #{tpu_custom_call.1} parent=1 // loop_header_branch
      %20 = sbr.rel (%p18) target = $region8
    $region5: #{tpu_custom_call.1} parent=1 // loop_body
      %s22 = ssub.s32 %s17, 1
      %s23 = ssub.s32 %s17, 2
      %s24 = sadd.s32 %s17, 1
      %s26 = sadd.s32 %s25, 1
      %p29 = scmp.eq.s32.totalorder %s17, 1
      %p30 = scmp.ne.s32.totalorder %s25, %s27
      %p31 = scmp.eq.s32.totalorder %s17, 0
      %p32 = por %p30, %p31
      %p33 = scmp.ne.s32.totalorder %s25, %s27
      %p34 = scmp.eq.s32.totalorder %s22, 1
      %p35 = por %p33, %p34
      %p36 = scmp.ne.s32.totalorder %s27, %s28
      %p37 = scmp.eq.s32.totalorder %s22, 0
      %p38 = por %p36, %p37
      %p39 = scmp.ne.s32.totalorder %s27, %s28
      %p40 = scmp.eq.s32.totalorder %s23, 1
      %p41 = por %p39, %p40
      %p43 = scmp.ne.s32.totalorder %s28, %s42
      %p44 = scmp.eq.s32.totalorder %s23, 0
      %p45 = por %p43, %p44
      %s47 = sadd.s32 %s46, 1
      %p50 = scmp.eq.s32.totalorder %s17, 1
      %p51 = scmp.ne.s32.totalorder %s46, %s48
      %p52 = scmp.eq.s32.totalorder %s17, 0
      %p53 = por %p51, %p52
      %p54 = scmp.ne.s32.totalorder %s46, %s48
      %p55 = scmp.eq.s32.totalorder %s22, 1
      %p56 = por %p54, %p55
      %p57 = scmp.ne.s32.totalorder %s48, %s49
      %p58 = scmp.eq.s32.totalorder %s22, 0
      %p59 = por %p57, %p58
      %p60 = scmp.ne.s32.totalorder %s48, %s49
      %p61 = scmp.eq.s32.totalorder %s23, 1
      %p62 = por %p60, %p61
      %p64 = scmp.ne.s32.totalorder %s49, %s63
      %p65 = scmp.eq.s32.totalorder %s23, 0
      %p66 = por %p64, %p65
      %s68 = sadd.s32 %s67, 1
      %p71 = scmp.eq.s32.totalorder %s17, 1
      %p72 = scmp.ne.s32.totalorder %s67, %s69
      %p73 = scmp.eq.s32.totalorder %s17, 0
      %p74 = por %p72, %p73
      %p75 = scmp.ne.s32.totalorder %s67, %s69
      %p76 = scmp.eq.s32.totalorder %s22, 1
      %p77 = por %p75, %p76
      %p78 = scmp.ne.s32.totalorder %s69, %s70
      %p79 = scmp.eq.s32.totalorder %s22, 0
      %p80 = por %p78, %p79
      %p81 = scmp.ne.s32.totalorder %s69, %s70
      %p82 = scmp.eq.s32.totalorder %s23, 1
      %p83 = por %p81, %p82
      %p85 = scmp.ne.s32.totalorder %s70, %s84
      %p86 = scmp.eq.s32.totalorder %s23, 0
      %p87 = por %p85, %p86
      %s89 = sadd.s32 %s88, 1
      %p92 = scmp.eq.s32.totalorder %s17, 1
      %p93 = scmp.ne.s32.totalorder %s88, %s90
      %p94 = scmp.eq.s32.totalorder %s17, 0
      %p95 = por %p93, %p94
      %p96 = scmp.ne.s32.totalorder %s88, %s90
      %p97 = scmp.eq.s32.totalorder %s22, 1
      %p98 = por %p96, %p97
      %p99 = scmp.ne.s32.totalorder %s90, %s91
      %p100 = scmp.eq.s32.totalorder %s22, 0
      %p101 = por %p99, %p100
      %p102 = scmp.ne.s32.totalorder %s90, %s91
      %p103 = scmp.eq.s32.totalorder %s23, 1
      %p104 = por %p102, %p103
      %p106 = scmp.ne.s32.totalorder %s91, %s105
      %p107 = scmp.eq.s32.totalorder %s23, 0
      %p108 = por %p106, %p107
      %s110 = sadd.s32 %s109, 1
      %p113 = scmp.eq.s32.totalorder %s17, 1
      %p114 = scmp.ne.s32.totalorder %s109, %s111
      %p115 = scmp.eq.s32.totalorder %s17, 0
      %p116 = por %p114, %p115
      %p117 = scmp.ne.s32.totalorder %s109, %s111
      %p118 = scmp.eq.s32.totalorder %s22, 1
      %p119 = por %p117, %p118
      %p120 = scmp.ne.s32.totalorder %s111, %s112
      %p121 = scmp.eq.s32.totalorder %s22, 0
      %p122 = por %p120, %p121
      %p123 = scmp.ne.s32.totalorder %s111, %s112
      %p124 = scmp.eq.s32.totalorder %s23, 1
      %p125 = por %p123, %p124
      %p127 = scmp.ne.s32.totalorder %s112, %s126
      %p128 = scmp.eq.s32.totalorder %s23, 0
      %p129 = por %p127, %p128
      %s131 = sadd.s32 %s130, 1
      %p134 = scmp.eq.s32.totalorder %s17, 1
      %p135 = scmp.ne.s32.totalorder %s130, %s132
      %p136 = scmp.eq.s32.totalorder %s17, 0
      %p137 = por %p135, %p136
      %p138 = scmp.ne.s32.totalorder %s130, %s132
      %p139 = scmp.eq.s32.totalorder %s22, 1
      %p140 = por %p138, %p139
      %p141 = scmp.ne.s32.totalorder %s132, %s133
      %p142 = scmp.eq.s32.totalorder %s22, 0
      %p143 = por %p141, %p142
      %p144 = scmp.ne.s32.totalorder %s132, %s133
      %p145 = scmp.eq.s32.totalorder %s23, 1
      %p146 = por %p144, %p145
      %p148 = scmp.ne.s32.totalorder %s133, %s147
      %p149 = scmp.eq.s32.totalorder %s23, 0
      %p150 = por %p148, %p149
      %s151 = ssub.s32 %s17, %s24
      %p152 = scmp.eq.s32.totalorder %s151, 0
      %s154 = sadd.s32 %s153, 1
      %s155 = scalar_select %p152, %s153, %s154
      %p158 = pneg %p152
      %p159 = scmp.eq.s32.totalorder %s17, 1
      %p160 = por %p158, %p159
      %p161 = scmp.ne.s32.totalorder %s153, %s156
      %p162 = scmp.eq.s32.totalorder %s17, 0
      %p163 = por %p161, %p162
      %p164 = scmp.ne.s32.totalorder %s153, %s156
      %p165 = scmp.eq.s32.totalorder %s22, 1
      %p166 = por %p164, %p165
      %p167 = scmp.ne.s32.totalorder %s156, %s157
      %p168 = scmp.eq.s32.totalorder %s22, 0
      %p169 = por %p167, %p168
      %p170 = scmp.ne.s32.totalorder %s156, %s157
      %p171 = scmp.eq.s32.totalorder %s23, 1
      %p172 = por %p170, %p171
      %p174 = scmp.ne.s32.totalorder %s157, %s173
      %p175 = scmp.eq.s32.totalorder %s23, 0
      %p176 = por %p174, %p175
      %s177 = ssub.s32 %s17, %s24
      %p178 = scmp.eq.s32.totalorder %s177, 0
      %s180 = sadd.s32 %s179, 1
      %s181 = scalar_select %p178, %s179, %s180
      %p184 = pneg %p178
      %p185 = scmp.eq.s32.totalorder %s17, 1
      %p186 = por %p184, %p185
      %p187 = scmp.ne.s32.totalorder %s179, %s182
      %p188 = scmp.eq.s32.totalorder %s17, 0
      %p189 = por %p187, %p188
      %p190 = scmp.ne.s32.totalorder %s179, %s182
      %p191 = scmp.eq.s32.totalorder %s22, 1
      %p192 = por %p190, %p191
      %p193 = scmp.ne.s32.totalorder %s182, %s183
      %p194 = scmp.eq.s32.totalorder %s22, 0
      %p195 = por %p193, %p194
      %p196 = scmp.ne.s32.totalorder %s182, %s183
      %p197 = scmp.eq.s32.totalorder %s23, 1
      %p198 = por %p196, %p197
      %p200 = scmp.ne.s32.totalorder %s183, %s199
      %p201 = scmp.eq.s32.totalorder %s23, 0
      %p202 = por %p200, %p201
      %s203 = ssub.s32 %s17, %s24
      %p204 = scmp.eq.s32.totalorder %s203, 0
      %s206 = sadd.s32 %s205, 1
      %s207 = scalar_select %p204, %s205, %s206
      %p210 = pneg %p204
      %p211 = scmp.eq.s32.totalorder %s17, 1
      %p212 = por %p210, %p211
      %p213 = scmp.ne.s32.totalorder %s205, %s208
      %p214 = scmp.eq.s32.totalorder %s17, 0
      %p215 = por %p213, %p214
      %p216 = scmp.ne.s32.totalorder %s205, %s208
      %p217 = scmp.eq.s32.totalorder %s22, 1
      %p218 = por %p216, %p217
      %p219 = scmp.ne.s32.totalorder %s208, %s209
      %p220 = scmp.eq.s32.totalorder %s22, 0
      %p221 = por %p219, %p220
      %p222 = scmp.ne.s32.totalorder %s208, %s209
      %p223 = scmp.eq.s32.totalorder %s23, 1
      %p224 = por %p222, %p223
      %p226 = scmp.ne.s32.totalorder %s209, %s225
      %p227 = scmp.eq.s32.totalorder %s23, 0
      %p228 = por %p226, %p227
      %p229 = scmp.le.s32.totalorder 1, %s17
      %p230 = scmp.lt.s32.totalorder %s17, 3
      %p231 = pnand %p229, %p230
      %p232 = pneg %p231
      // Predicated region
      $region9: #{tpu_custom_call.1} parent=5 // pred_check
        _
      $region10: #{tpu_custom_call.1} parent=5 // pred_check_branch
        %234 = sbr.rel (%p231) target = $region12
      $region11: #{tpu_custom_call.1} parent=5 // pred_region
        %s235 = ssub.s32 %s17, 1
        // Predicated region
        $region13: #{tpu_custom_call.1} parent=11 // pred_check
          %p236 = pneg %p38
        $region14: #{tpu_custom_call.1} parent=11 // pred_check_branch
          %238 = sbr.rel (%p236) target = $region16
        $region15: #{tpu_custom_call.1} parent=11 // pred_region
          _
        $region16: #{tpu_custom_call.1} parent=11 // pred_fallthru
          _
        // Predicated region
        $region17: #{tpu_custom_call.1} parent=11 // pred_check
          %p239 = pneg %p59
        $region18: #{tpu_custom_call.1} parent=11 // pred_check_branch
          %241 = sbr.rel (%p239) target = $region20
        $region19: #{tpu_custom_call.1} parent=11 // pred_region
          _
        $region20: #{tpu_custom_call.1} parent=11 // pred_fallthru
          _
        // Predicated region
        $region21: #{tpu_custom_call.1} parent=11 // pred_check
          %p242 = pneg %p80
        $region22: #{tpu_custom_call.1} parent=11 // pred_check_branch
          %244 = sbr.rel (%p242) target = $region24
        $region23: #{tpu_custom_call.1} parent=11 // pred_region
          _
        $region24: #{tpu_custom_call.1} parent=11 // pred_fallthru
          _
        // Predicated region
        $region25: #{tpu_custom_call.1} parent=11 // pred_check
          %p245 = pneg %p101
        $region26: #{tpu_custom_call.1} parent=11 // pred_check_branch
          %247 = sbr.rel (%p245) target = $region28
        $region27: #{tpu_custom_call.1} parent=11 // pred_region
          _
        $region28: #{tpu_custom_call.1} parent=11 // pred_fallthru
          _
        // Predicated region
        $region29: #{tpu_custom_call.1} parent=11 // pred_check
          %p248 = pneg %p122
        $region30: #{tpu_custom_call.1} parent=11 // pred_check_branch
          %250 = sbr.rel (%p248) target = $region32
        $region31: #{tpu_custom_call.1} parent=11 // pred_region
          _
        $region32: #{tpu_custom_call.1} parent=11 // pred_fallthru
          _
        // Predicated region
        $region33: #{tpu_custom_call.1} parent=11 // pred_check
          %p251 = pneg %p143
        $region34: #{tpu_custom_call.1} parent=11 // pred_check_branch
          %253 = sbr.rel (%p251) target = $region36
        $region35: #{tpu_custom_call.1} parent=11 // pred_region
          _
        $region36: #{tpu_custom_call.1} parent=11 // pred_fallthru
          _
      $region12: #{tpu_custom_call.1} parent=5 // pred_fallthru
        _
      %p254 = scmp.lt.s32.totalorder %s17, 2
      // Predicated region
      $region37: #{tpu_custom_call.1} parent=5 // pred_check
        %p255 = pneg %p254
      $region38: #{tpu_custom_call.1} parent=5 // pred_check_branch
        %257 = sbr.rel (%p255) target = $region40
      $region39: #{tpu_custom_call.1} parent=5 // pred_region
        // Predicated region
        $region41: #{tpu_custom_call.1} parent=39 // pred_check
          %p258 = pneg %p163
        $region42: #{tpu_custom_call.1} parent=39 // pred_check_branch
          %260 = sbr.rel (%p258) target = $region44
        $region43: #{tpu_custom_call.1} parent=39 // pred_region
          %p261 = scmp.lt.s32.totalorder %s17, 1
          %s262 = scalar_select %p261, %s17, 1
          %s263 = smul.addr %s262, 8
          %s264 = smul.addr %s263, 8
          %s265 = scalar_lea.vmem %s6, %s264
        $region44: #{tpu_custom_call.1} parent=39 // pred_fallthru
          _
        // Predicated region
        $region45: #{tpu_custom_call.1} parent=39 // pred_check
          %p266 = pneg %p189
        $region46: #{tpu_custom_call.1} parent=39 // pred_check_branch
          %268 = sbr.rel (%p266) target = $region48
        $region47: #{tpu_custom_call.1} parent=39 // pred_region
          %p269 = scmp.lt.s32.totalorder %s17, 1
          %s270 = scalar_select %p269, %s17, 1
          %s271 = smul.addr %s270, 8
          %s272 = smul.addr %s271, 8
          %s273 = scalar_lea.vmem %s7, %s272
        $region48: #{tpu_custom_call.1} parent=39 // pred_fallthru
          _
      $region40: #{tpu_custom_call.1} parent=5 // pred_fallthru
        _
      %p274 = scmp.le.s32.totalorder 1, %s17
      %p275 = scmp.lt.s32.totalorder %s17, 3
      %p276 = pnand %p274, %p275
      %p277 = pneg %p276
      // Predicated region
      $region49: #{tpu_custom_call.1} parent=5 // pred_check
        _
      $region50: #{tpu_custom_call.1} parent=5 // pred_check_branch
        %279 = sbr.rel (%p276) target = $region52
      $region51: #{tpu_custom_call.1} parent=5 // pred_region
        %s280 = ssub.s32 %s17, 1
        %p281 = pneg %p38
        %p282 = pneg %p35
        %p283 = pneg %p59
        %p284 = pneg %p56
        %p285 = pneg %p80
        %p286 = pneg %p77
        %p287 = pneg %p101
        %p288 = pneg %p98
        %p289 = pneg %p122
        %p290 = pneg %p119
        %p291 = pneg %p143
        %p292 = pneg %p140
        %p293 = scmp.lt.s32.totalorder %s22, 1
        %s294 = scalar_select %p293, %s22, 1
        %s295 = smul.addr %s294, 8
        %s296 = smul.addr %s295, 8
        %s297 = scalar_lea.vmem %s6, %s296
        %p298 = pneg %p169
        %p299 = pneg %p166
        %p300 = scmp.lt.s32.totalorder %s22, 1
        %s301 = scalar_select %p300, %s22, 1
        %s302 = smul.addr %s301, 8
        %s303 = smul.addr %s302, 8
        %s304 = scalar_lea.vmem %s7, %s303
        %p305 = pneg %p195
        %p306 = pneg %p192
        %p307 = pneg %p221
        %p308 = pneg %p218
        %s309 = sand.u32 %s208, 1
        %s310 = scalar_lea.sflag [#allocation3], %s309
        %s311 = sand.u32 %s208, 1
        %s312 = smul.addr %s311, 4
        %s313 = scalar_lea.vmem [#allocation2], %s312
        %p314 = scmp.lt.s32.totalorder %s22, 1
        %s315 = scalar_select %p314, %s22, 1
        %s316 = smul.addr %s315, 8
        %s317 = smul.addr %s316, 8
        %s318 = scalar_lea.vmem %s6, %s317
        %p319 = scmp.lt.s32.totalorder %s22, 1
        %s320 = scalar_select %p319, %s22, 1
        %s321 = smul.addr %s320, 8
        %s322 = smul.addr %s321, 8
        %s323 = scalar_lea.vmem %s7, %s322
        %v324 = vld [vmem:[%s0] sm:$0xf]
        %v325 = vld [vmem:[%s1] sm:$0xff]
        %v326 = vld [vmem:[%s1 + $0x8] sm:$0xff]
        %v327 = vld [vmem:[%s2] sm:$0xf]
        %v328 = vld [vmem:[%s3] sm:$0xf]
        %v329 = vld [vmem:[%s4] sm:$0xf]
        %v330 = vld [vmem:[%s5] sm:$0xf]
        %v331 = vld [vmem:[%s318] sm:$0xff]
        %v332 = vld [vmem:[%s318 + $0x8] sm:$0xff]
        %v333 = vld [vmem:[%s318 + $0x10] sm:$0xff]
        %v334 = vld [vmem:[%s318 + $0x18] sm:$0xff]
        %v335 = vld [vmem:[%s318 + $0x20] sm:$0xff]
        %v336 = vld [vmem:[%s318 + $0x28] sm:$0xff]
        %v337 = vld [vmem:[%s318 + $0x30] sm:$0xff]
        %v338 = vld [vmem:[%s318 + $0x38] sm:$0xff]
        %vm339 = vcmask 523264
        %v341 = vsel %vm339, %v324, 0
        %343 = vmatprep.subr.mxu0 0.0
        %344 = vmatpush1.msra.mxu0 %v331
        %345 = vmatprep.subr.mxu0 0.0
        %346 = vmatpush1.msra.mxu0 %v332
        %347 = vmatprep.subr.mxu0 0.0
        %348 = vmatpush1.msra.mxu0 %v333
        %349 = vmatprep.subr.mxu0 0.0
        %350 = vmatpush1.msra.mxu0 %v334
        %351 = vmatprep.subr.mxu0 0.0
        %352 = vmatpush1.msra.mxu0 %v335
        %353 = vmatprep.subr.mxu0 0.0
        %354 = vmatpush1.msra.mxu0 %v336
        %355 = vmatprep.subr.mxu0 0.0
        %356 = vmatpush1.msra.mxu0 %v337
        %357 = vmatprep.subr.mxu0 0.0
        %358 = vmatpush1.msra.mxu0 %v338
        %359 = vmatprep.subr.mxu0 0.0
        %360 = vmatpush1.msra.mxu0 0.0
        %361 = vmatprep.subr.mxu0 0.0
        %362 = vmatpush1.msra.mxu0 0.0
        %363 = vmatprep.subr.mxu0 0.0
        %364 = vmatpush1.msra.mxu0 0.0
        %365 = vmatprep.subr.mxu0 0.0
        %366 = vmatpush1.msra.mxu0 0.0
        %367 = vmatprep.subr.mxu0 0.0
        %368 = vmatpush1.msra.mxu0 0.0
        %369 = vmatprep.subr.mxu0 0.0
        %370 = vmatpush1.msra.mxu0 0.0
        %371 = vmatprep.subr.mxu0 0.0
        %372 = vmatpush1.msra.mxu0 0.0
        %373 = vmatprep.subr.mxu0 0.0
        %374 = vmatpush1.msra.mxu0 0.0
        %375 = vmatprep.subr.mxu0 0.0
        %376 = vmatpush1.msra.mxu0 0.0
        %377 = vmatprep.subr.mxu0 0.0
        %378 = vmatpush1.msra.mxu0 0.0
        %379 = vmatprep.subr.mxu0 0.0
        %380 = vmatpush1.msra.mxu0 0.0
        %381 = vmatprep.subr.mxu0 0.0
        %382 = vmatpush1.msra.mxu0 0.0
        %383 = vmatprep.subr.mxu0 0.0
        %384 = vmatpush1.msra.mxu0 0.0
        %385 = vmatprep.subr.mxu0 0.0
        %386 = vmatpush1.msra.mxu0 0.0
        %387 = vmatprep.subr.mxu0 0.0
        %388 = vmatpush1.msra.mxu0 0.0
        %389 = vmatprep.subr.mxu0 0.0
        %390 = vmatpush1.msra.mxu0 0.0
        %391 = vmatprep.subr.mxu0 0.0
        %392 = vmatpush1.msra.mxu0 0.0
        %393 = vmatprep.subr.mxu0 0.0
        %394 = vmatpush1.msra.mxu0 0.0
        %395 = vmatprep.subr.mxu0 0.0
        %396 = vmatpush1.msra.mxu0 0.0
        %397 = vmatprep.subr.mxu0 0.0
        %398 = vmatpush1.msra.mxu0 0.0
        %399 = vmatprep.subr.mxu0 0.0
        %400 = vmatpush1.msra.mxu0 0.0
        %401 = vmatprep.subr.mxu0 0.0
        %402 = vmatpush1.msra.mxu0 0.0
        %403 = vmatprep.subr.mxu0 0.0
        %404 = vmatpush1.msra.mxu0 0.0
        %405 = vmatprep.subr.mxu0 0.0
        %406 = vmatpush1.msra.mxu0 0.0
        %407 = vmatprep.mubr.f32.mxu0 0.0
        %408 = vmatmul.mubr.f32.gmra.mrb[0].mxu0 %v341
        %v409 = vpop.f32.mrb[0].mxu0
        %v410 = vadd.f32 0.0, %v409
        %v411 = vpop.f32.mrb[0].mxu0
        %412 = vdwg.mxu0
        %v413 = vld [vmem:[%s323] sm:$0xff]
        %v414 = vld [vmem:[%s323 + $0x8] sm:$0xff]
        %v415 = vld [vmem:[%s323 + $0x10] sm:$0xff]
        %v416 = vld [vmem:[%s323 + $0x18] sm:$0xff]
        %v417 = vld [vmem:[%s323 + $0x20] sm:$0xff]
        %v418 = vld [vmem:[%s323 + $0x28] sm:$0xff]
        %v419 = vld [vmem:[%s323 + $0x30] sm:$0xff]
        %v420 = vld [vmem:[%s323 + $0x38] sm:$0xff]
        %421 = vmatprep.subr.mxu0 0.0
        %422 = vmatpush1.msra.mxu0 %v413
        %423 = vmatprep.subr.mxu0 0.0
        %424 = vmatpush1.msra.mxu0 %v414
        %425 = vmatprep.subr.mxu0 0.0
        %426 = vmatpush1.msra.mxu0 %v415
        %427 = vmatprep.subr.mxu0 0.0
        %428 = vmatpush1.msra.mxu0 %v416
        %429 = vmatprep.subr.mxu0 0.0
        %430 = vmatpush1.msra.mxu0 %v417
        %431 = vmatprep.subr.mxu0 0.0
        %432 = vmatpush1.msra.mxu0 %v418
        %433 = vmatprep.subr.mxu0 0.0
        %434 = vmatpush1.msra.mxu0 %v419
        %435 = vmatprep.subr.mxu0 0.0
        %436 = vmatpush1.msra.mxu0 %v420
        %437 = vmatprep.subr.mxu0 0.0
        %438 = vmatpush1.msra.mxu0 0.0
        %439 = vmatprep.subr.mxu0 0.0
        %440 = vmatpush1.msra.mxu0 0.0
        %441 = vmatprep.subr.mxu0 0.0
        %442 = vmatpush1.msra.mxu0 0.0
        %443 = vmatprep.subr.mxu0 0.0
        %444 = vmatpush1.msra.mxu0 0.0
        %445 = vmatprep.subr.mxu0 0.0
        %446 = vmatpush1.msra.mxu0 0.0
        %447 = vmatprep.subr.mxu0 0.0
        %448 = vmatpush1.msra.mxu0 0.0
        %449 = vmatprep.subr.mxu0 0.0
        %450 = vmatpush1.msra.mxu0 0.0
        %451 = vmatprep.subr.mxu0 0.0
        %452 = vmatpush1.msra.mxu0 0.0
        %453 = vmatprep.subr.mxu0 0.0
        %454 = vmatpush1.msra.mxu0 0.0
        %455 = vmatprep.subr.mxu0 0.0
        %456 = vmatpush1.msra.mxu0 0.0
        %457 = vmatprep.subr.mxu0 0.0
        %458 = vmatpush1.msra.mxu0 0.0
        %459 = vmatprep.subr.mxu0 0.0
        %460 = vmatpush1.msra.mxu0 0.0
        %461 = vmatprep.subr.mxu0 0.0
        %462 = vmatpush1.msra.mxu0 0.0
        %463 = vmatprep.subr.mxu0 0.0
        %464 = vmatpush1.msra.mxu0 0.0
        %465 = vmatprep.subr.mxu0 0.0
        %466 = vmatpush1.msra.mxu0 0.0
        %467 = vmatprep.subr.mxu0 0.0
        %468 = vmatpush1.msra.mxu0 0.0
        %469 = vmatprep.subr.mxu0 0.0
        %470 = vmatpush1.msra.mxu0 0.0
        %471 = vmatprep.subr.mxu0 0.0
        %472 = vmatpush1.msra.mxu0 0.0
        %473 = vmatprep.subr.mxu0 0.0
        %474 = vmatpush1.msra.mxu0 0.0
        %475 = vmatprep.subr.mxu0 0.0
        %476 = vmatpush1.msra.mxu0 0.0
        %477 = vmatprep.subr.mxu0 0.0
        %478 = vmatpush1.msra.mxu0 0.0
        %479 = vmatprep.subr.mxu0 0.0
        %480 = vmatpush1.msra.mxu0 0.0
        %481 = vmatprep.subr.mxu0 0.0
        %482 = vmatpush1.msra.mxu0 0.0
        %483 = vmatprep.subr.mxu0 0.0
        %484 = vmatpush1.msra.mxu0 0.0
        %485 = vmatprep.mubr.f32.mxu0 0.0
        %486 = vmatmul.mubr.f32.gmra.mrb[0].mxu0 %v341
        %v487 = vpop.f32.mrb[0].mxu0
        %v488 = vadd.f32 0.0, %v487
        %v489 = vpop.f32.mrb[0].mxu0
        %490 = vdwg.mxu0
        %v491 = vsub.f32 %v410, %v488
        %vm492 = vcmask 130048
        %v494 = vsel %vm492, %v491, 0
        %496 = vmatprep.subr.mxu0 0.0
        %497 = vmatpush1.msra.mxu0 %v325
        %498 = vmatprep.subr.mxu0 0.0
        %499 = vmatpush1.msra.mxu0 %v326
        %500 = vmatprep.subr.mxu0 0.0
        %501 = vmatpush1.msra.mxu0 0.0
        %502 = vmatprep.subr.mxu0 0.0
        %503 = vmatpush1.msra.mxu0 0.0
        %504 = vmatprep.subr.mxu0 0.0
        %505 = vmatpush1.msra.mxu0 0.0
        %506 = vmatprep.subr.mxu0 0.0
        %507 = vmatpush1.msra.mxu0 0.0
        %508 = vmatprep.subr.mxu0 0.0
        %509 = vmatpush1.msra.mxu0 0.0
        %510 = vmatprep.subr.mxu0 0.0
        %511 = vmatpush1.msra.mxu0 0.0
        %512 = vmatprep.subr.mxu0 0.0
        %513 = vmatpush1.msra.mxu0 0.0
        %514 = vmatprep.subr.mxu0 0.0
        %515 = vmatpush1.msra.mxu0 0.0
        %516 = vmatprep.subr.mxu0 0.0
        %517 = vmatpush1.msra.mxu0 0.0
        %518 = vmatprep.subr.mxu0 0.0
        %519 = vmatpush1.msra.mxu0 0.0
        %520 = vmatprep.subr.mxu0 0.0
        %521 = vmatpush1.msra.mxu0 0.0
        %522 = vmatprep.subr.mxu0 0.0
        %523 = vmatpush1.msra.mxu0 0.0
        %524 = vmatprep.subr.mxu0 0.0
        %525 = vmatpush1.msra.mxu0 0.0
        %526 = vmatprep.subr.mxu0 0.0
        %527 = vmatpush1.msra.mxu0 0.0
        %528 = vmatprep.subr.mxu0 0.0
        %529 = vmatpush1.msra.mxu0 0.0
        %530 = vmatprep.subr.mxu0 0.0
        %531 = vmatpush1.msra.mxu0 0.0
        %532 = vmatprep.subr.mxu0 0.0
        %533 = vmatpush1.msra.mxu0 0.0
        %534 = vmatprep.subr.mxu0 0.0
        %535 = vmatpush1.msra.mxu0 0.0
        %536 = vmatprep.subr.mxu0 0.0
        %537 = vmatpush1.msra.mxu0 0.0
        %538 = vmatprep.subr.mxu0 0.0
        %539 = vmatpush1.msra.mxu0 0.0
        %540 = vmatprep.subr.mxu0 0.0
        %541 = vmatpush1.msra.mxu0 0.0
        %542 = vmatprep.subr.mxu0 0.0
        %543 = vmatpush1.msra.mxu0 0.0
        %544 = vmatprep.subr.mxu0 0.0
        %545 = vmatpush1.msra.mxu0 0.0
        %546 = vmatprep.subr.mxu0 0.0
        %547 = vmatpush1.msra.mxu0 0.0
        %548 = vmatprep.subr.mxu0 0.0
        %549 = vmatpush1.msra.mxu0 0.0
        %550 = vmatprep.subr.mxu0 0.0
        %551 = vmatpush1.msra.mxu0 0.0
        %552 = vmatprep.subr.mxu0 0.0
        %553 = vmatpush1.msra.mxu0 0.0
        %554 = vmatprep.subr.mxu0 0.0
        %555 = vmatpush1.msra.mxu0 0.0
        %556 = vmatprep.subr.mxu0 0.0
        %557 = vmatpush1.msra.mxu0 0.0
        %558 = vmatprep.subr.mxu0 0.0
        %559 = vmatpush1.msra.mxu0 0.0
        %560 = vmatprep.mubr.f32.mxu0 0.0
        %561 = vmatmul.mubr.f32.gmra.mrb[0].mxu0 %v494
        %v562 = vpop.f32.mrb[0].mxu0
        %v563 = vadd.f32 0.0, %v562
        %v564 = vpop.f32.mrb[0].mxu0
        %565 = vdwg.mxu0
        %vm566 = vcmask 31744
        %v568 = vsel %vm566, %v563, 0
        %vm570 = vcmask 1043456
        %v572 = vsel %vm570, %v327, 0
        %574 = vmatprep.subr.mxu0 0.0
        %575 = vmatpush1.msra.mxu0 %v572
        %576 = vmatprep.subr.mxu0 0.0
        %577 = vmatpush1.msra.mxu0 0.0
        %578 = vmatprep.subr.mxu0 0.0
        %579 = vmatpush1.msra.mxu0 0.0
        %580 = vmatprep.subr.mxu0 0.0
        %581 = vmatpush1.msra.mxu0 0.0
        %582 = vmatprep.subr.mxu0 0.0
        %583 = vmatpush1.msra.mxu0 0.0
        %584 = vmatprep.subr.mxu0 0.0
        %585 = vmatpush1.msra.mxu0 0.0
        %586 = vmatprep.subr.mxu0 0.0
        %587 = vmatpush1.msra.mxu0 0.0
        %588 = vmatprep.subr.mxu0 0.0
        %589 = vmatpush1.msra.mxu0 0.0
        %590 = vmatprep.subr.mxu0 0.0
        %591 = vmatpush1.msra.mxu0 0.0
        %592 = vmatprep.subr.mxu0 0.0
        %593 = vmatpush1.msra.mxu0 0.0
        %594 = vmatprep.subr.mxu0 0.0
        %595 = vmatpush1.msra.mxu0 0.0
        %596 = vmatprep.subr.mxu0 0.0
        %597 = vmatpush1.msra.mxu0 0.0
        %598 = vmatprep.subr.mxu0 0.0
        %599 = vmatpush1.msra.mxu0 0.0
        %600 = vmatprep.subr.mxu0 0.0
        %601 = vmatpush1.msra.mxu0 0.0
        %602 = vmatprep.subr.mxu0 0.0
        %603 = vmatpush1.msra.mxu0 0.0
        %604 = vmatprep.subr.mxu0 0.0
        %605 = vmatpush1.msra.mxu0 0.0
        %606 = vmatprep.subr.mxu0 0.0
        %607 = vmatpush1.msra.mxu0 0.0
        %608 = vmatprep.subr.mxu0 0.0
        %609 = vmatpush1.msra.mxu0 0.0
        %610 = vmatprep.subr.mxu0 0.0
        %611 = vmatpush1.msra.mxu0 0.0
        %612 = vmatprep.subr.mxu0 0.0
        %613 = vmatpush1.msra.mxu0 0.0
        %614 = vmatprep.subr.mxu0 0.0
        %615 = vmatpush1.msra.mxu0 0.0
        %616 = vmatprep.subr.mxu0 0.0
        %617 = vmatpush1.msra.mxu0 0.0
        %618 = vmatprep.subr.mxu0 0.0
        %619 = vmatpush1.msra.mxu0 0.0
        %620 = vmatprep.subr.mxu0 0.0
        %621 = vmatpush1.msra.mxu0 0.0
        %622 = vmatprep.subr.mxu0 0.0
        %623 = vmatpush1.msra.mxu0 0.0
        %624 = vmatprep.subr.mxu0 0.0
        %625 = vmatpush1.msra.mxu0 0.0
        %626 = vmatprep.subr.mxu0 0.0
        %627 = vmatpush1.msra.mxu0 0.0
        %628 = vmatprep.subr.mxu0 0.0
        %629 = vmatpush1.msra.mxu0 0.0
        %630 = vmatprep.subr.mxu0 0.0
        %631 = vmatpush1.msra.mxu0 0.0
        %632 = vmatprep.subr.mxu0 0.0
        %633 = vmatpush1.msra.mxu0 0.0
        %634 = vmatprep.subr.mxu0 0.0
        %635 = vmatpush1.msra.mxu0 0.0
        %636 = vmatprep.subr.mxu0 0.0
        %637 = vmatpush1.msra.mxu0 0.0
        %638 = vmatprep.mubr.f32.mxu0 0.0
        %639 = vmatmul.mubr.f32.gmra.mrb[0].mxu0 %v568
        %v640 = vpop.f32.mrb[0].mxu0
        %v641 = vadd.f32 0.0, %v640
        %v642 = vpop.f32.mrb[0].mxu0
        %643 = vdwg.mxu0
        %v645 = vsel %vm570, %v328, 0
        %647 = vmatprep.subr.mxu0 0.0
        %648 = vmatpush1.msra.mxu0 %v645
        %649 = vmatprep.subr.mxu0 0.0
        %650 = vmatpush1.msra.mxu0 0.0
        %651 = vmatprep.subr.mxu0 0.0
        %652 = vmatpush1.msra.mxu0 0.0
        %653 = vmatprep.subr.mxu0 0.0
        %654 = vmatpush1.msra.mxu0 0.0
        %655 = vmatprep.subr.mxu0 0.0
        %656 = vmatpush1.msra.mxu0 0.0
        %657 = vmatprep.subr.mxu0 0.0
        %658 = vmatpush1.msra.mxu0 0.0
        %659 = vmatprep.subr.mxu0 0.0
        %660 = vmatpush1.msra.mxu0 0.0
        %661 = vmatprep.subr.mxu0 0.0
        %662 = vmatpush1.msra.mxu0 0.0
        %663 = vmatprep.subr.mxu0 0.0
        %664 = vmatpush1.msra.mxu0 0.0
        %665 = vmatprep.subr.mxu0 0.0
        %666 = vmatpush1.msra.mxu0 0.0
        %667 = vmatprep.subr.mxu0 0.0
        %668 = vmatpush1.msra.mxu0 0.0
        %669 = vmatprep.subr.mxu0 0.0
        %670 = vmatpush1.msra.mxu0 0.0
        %671 = vmatprep.subr.mxu0 0.0
        %672 = vmatpush1.msra.mxu0 0.0
        %673 = vmatprep.subr.mxu0 0.0
        %674 = vmatpush1.msra.mxu0 0.0
        %675 = vmatprep.subr.mxu0 0.0
        %676 = vmatpush1.msra.mxu0 0.0
        %677 = vmatprep.subr.mxu0 0.0
        %678 = vmatpush1.msra.mxu0 0.0
        %679 = vmatprep.subr.mxu0 0.0
        %680 = vmatpush1.msra.mxu0 0.0
        %681 = vmatprep.subr.mxu0 0.0
        %682 = vmatpush1.msra.mxu0 0.0
        %683 = vmatprep.subr.mxu0 0.0
        %684 = vmatpush1.msra.mxu0 0.0
        %685 = vmatprep.subr.mxu0 0.0
        %686 = vmatpush1.msra.mxu0 0.0
        %687 = vmatprep.subr.mxu0 0.0
        %688 = vmatpush1.msra.mxu0 0.0
        %689 = vmatprep.subr.mxu0 0.0
        %690 = vmatpush1.msra.mxu0 0.0
        %691 = vmatprep.subr.mxu0 0.0
        %692 = vmatpush1.msra.mxu0 0.0
        %693 = vmatprep.subr.mxu0 0.0
        %694 = vmatpush1.msra.mxu0 0.0
        %695 = vmatprep.subr.mxu0 0.0
        %696 = vmatpush1.msra.mxu0 0.0
        %697 = vmatprep.subr.mxu0 0.0
        %698 = vmatpush1.msra.mxu0 0.0
        %699 = vmatprep.subr.mxu0 0.0
        %700 = vmatpush1.msra.mxu0 0.0
        %701 = vmatprep.subr.mxu0 0.0
        %702 = vmatpush1.msra.mxu0 0.0
        %703 = vmatprep.subr.mxu0 0.0
        %704 = vmatpush1.msra.mxu0 0.0
        %705 = vmatprep.subr.mxu0 0.0
        %706 = vmatpush1.msra.mxu0 0.0
        %707 = vmatprep.subr.mxu0 0.0
        %708 = vmatpush1.msra.mxu0 0.0
        %709 = vmatprep.subr.mxu0 0.0
        %710 = vmatpush1.msra.mxu0 0.0
        %711 = vmatprep.mubr.f32.mxu0 0.0
        %712 = vmatmul.mubr.f32.gmra.mrb[0].mxu0 %v568
        %v713 = vpop.f32.mrb[0].mxu0
        %v714 = vadd.f32 0.0, %v713
        %v715 = vpop.f32.mrb[0].mxu0
        %716 = vdwg.mxu0
        %v718 = vsel %vm566, %v329, 0
        %v720 = vsel %vm570, %v563, 0
        %722 = vmatprep.subr.mxu0 0.0
        %723 = vmatpush1.msra.mxu0 %v720
        %724 = vmatprep.subr.mxu0 0.0
        %725 = vmatpush1.msra.mxu0 0.0
        %726 = vmatprep.subr.mxu0 0.0
        %727 = vmatpush1.msra.mxu0 0.0
        %728 = vmatprep.subr.mxu0 0.0
        %729 = vmatpush1.msra.mxu0 0.0
        %730 = vmatprep.subr.mxu0 0.0
        %731 = vmatpush1.msra.mxu0 0.0
        %732 = vmatprep.subr.mxu0 0.0
        %733 = vmatpush1.msra.mxu0 0.0
        %734 = vmatprep.subr.mxu0 0.0
        %735 = vmatpush1.msra.mxu0 0.0
        %736 = vmatprep.subr.mxu0 0.0
        %737 = vmatpush1.msra.mxu0 0.0
        %738 = vmatprep.subr.mxu0 0.0
        %739 = vmatpush1.msra.mxu0 0.0
        %740 = vmatprep.subr.mxu0 0.0
        %741 = vmatpush1.msra.mxu0 0.0
        %742 = vmatprep.subr.mxu0 0.0
        %743 = vmatpush1.msra.mxu0 0.0
        %744 = vmatprep.subr.mxu0 0.0
        %745 = vmatpush1.msra.mxu0 0.0
        %746 = vmatprep.subr.mxu0 0.0
        %747 = vmatpush1.msra.mxu0 0.0
        %748 = vmatprep.subr.mxu0 0.0
        %749 = vmatpush1.msra.mxu0 0.0
        %750 = vmatprep.subr.mxu0 0.0
        %751 = vmatpush1.msra.mxu0 0.0
        %752 = vmatprep.subr.mxu0 0.0
        %753 = vmatpush1.msra.mxu0 0.0
        %754 = vmatprep.subr.mxu0 0.0
        %755 = vmatpush1.msra.mxu0 0.0
        %756 = vmatprep.subr.mxu0 0.0
        %757 = vmatpush1.msra.mxu0 0.0
        %758 = vmatprep.subr.mxu0 0.0
        %759 = vmatpush1.msra.mxu0 0.0
        %760 = vmatprep.subr.mxu0 0.0
        %761 = vmatpush1.msra.mxu0 0.0
        %762 = vmatprep.subr.mxu0 0.0
        %763 = vmatpush1.msra.mxu0 0.0
        %764 = vmatprep.subr.mxu0 0.0
        %765 = vmatpush1.msra.mxu0 0.0
        %766 = vmatprep.subr.mxu0 0.0
        %767 = vmatpush1.msra.mxu0 0.0
        %768 = vmatprep.subr.mxu0 0.0
        %769 = vmatpush1.msra.mxu0 0.0
        %770 = vmatprep.subr.mxu0 0.0
        %771 = vmatpush1.msra.mxu0 0.0
        %772 = vmatprep.subr.mxu0 0.0
        %773 = vmatpush1.msra.mxu0 0.0
        %774 = vmatprep.subr.mxu0 0.0
        %775 = vmatpush1.msra.mxu0 0.0
        %776 = vmatprep.subr.mxu0 0.0
        %777 = vmatpush1.msra.mxu0 0.0
        %778 = vmatprep.subr.mxu0 0.0
        %779 = vmatpush1.msra.mxu0 0.0
        %780 = vmatprep.subr.mxu0 0.0
        %781 = vmatpush1.msra.mxu0 0.0
        %782 = vmatprep.subr.mxu0 0.0
        %783 = vmatpush1.msra.mxu0 0.0
        %784 = vmatprep.subr.mxu0 0.0
        %785 = vmatpush1.msra.mxu0 0.0
        %786 = vmatprep.mubr.f32.mxu0 0.0
        %787 = vmatmul.mubr.f32.gmra.mrb[0].mxu0 %v718
        %v788 = vpop.f32.mrb[0].mxu0
        %v789 = vadd.f32 0.0, %v788
        %v790 = vpop.f32.mrb[0].mxu0
        %791 = vdwg.mxu0
        %v793 = vsel %vm566, %v330, 0
        %795 = vmatprep.subr.mxu0 0.0
        %796 = vmatpush1.msra.mxu0 %v720
        %797 = vmatprep.subr.mxu0 0.0
        %798 = vmatpush1.msra.mxu0 0.0
        %799 = vmatprep.subr.mxu0 0.0
        %800 = vmatpush1.msra.mxu0 0.0
        %801 = vmatprep.subr.mxu0 0.0
        %802 = vmatpush1.msra.mxu0 0.0
        %803 = vmatprep.subr.mxu0 0.0
        %804 = vmatpush1.msra.mxu0 0.0
        %805 = vmatprep.subr.mxu0 0.0
        %806 = vmatpush1.msra.mxu0 0.0
        %807 = vmatprep.subr.mxu0 0.0
        %808 = vmatpush1.msra.mxu0 0.0
        %809 = vmatprep.subr.mxu0 0.0
        %810 = vmatpush1.msra.mxu0 0.0
        %811 = vmatprep.subr.mxu0 0.0
        %812 = vmatpush1.msra.mxu0 0.0
        %813 = vmatprep.subr.mxu0 0.0
        %814 = vmatpush1.msra.mxu0 0.0
        %815 = vmatprep.subr.mxu0 0.0
        %816 = vmatpush1.msra.mxu0 0.0
        %817 = vmatprep.subr.mxu0 0.0
        %818 = vmatpush1.msra.mxu0 0.0
        %819 = vmatprep.subr.mxu0 0.0
        %820 = vmatpush1.msra.mxu0 0.0
        %821 = vmatprep.subr.mxu0 0.0
        %822 = vmatpush1.msra.mxu0 0.0
        %823 = vmatprep.subr.mxu0 0.0
        %824 = vmatpush1.msra.mxu0 0.0
        %825 = vmatprep.subr.mxu0 0.0
        %826 = vmatpush1.msra.mxu0 0.0
        %827 = vmatprep.subr.mxu0 0.0
        %828 = vmatpush1.msra.mxu0 0.0
        %829 = vmatprep.subr.mxu0 0.0
        %830 = vmatpush1.msra.mxu0 0.0
        %831 = vmatprep.subr.mxu0 0.0
        %832 = vmatpush1.msra.mxu0 0.0
        %833 = vmatprep.subr.mxu0 0.0
        %834 = vmatpush1.msra.mxu0 0.0
        %835 = vmatprep.subr.mxu0 0.0
        %836 = vmatpush1.msra.mxu0 0.0
        %837 = vmatprep.subr.mxu0 0.0
        %838 = vmatpush1.msra.mxu0 0.0
        %839 = vmatprep.subr.mxu0 0.0
        %840 = vmatpush1.msra.mxu0 0.0
        %841 = vmatprep.subr.mxu0 0.0
        %842 = vmatpush1.msra.mxu0 0.0
        %843 = vmatprep.subr.mxu0 0.0
        %844 = vmatpush1.msra.mxu0 0.0
        %845 = vmatprep.subr.mxu0 0.0
        %846 = vmatpush1.msra.mxu0 0.0
        %847 = vmatprep.subr.mxu0 0.0
        %848 = vmatpush1.msra.mxu0 0.0
        %849 = vmatprep.subr.mxu0 0.0
        %850 = vmatpush1.msra.mxu0 0.0
        %851 = vmatprep.subr.mxu0 0.0
        %852 = vmatpush1.msra.mxu0 0.0
        %853 = vmatprep.subr.mxu0 0.0
        %854 = vmatpush1.msra.mxu0 0.0
        %855 = vmatprep.subr.mxu0 0.0
        %856 = vmatpush1.msra.mxu0 0.0
        %857 = vmatprep.subr.mxu0 0.0
        %858 = vmatpush1.msra.mxu0 0.0
        %859 = vmatprep.mubr.f32.mxu0 0.0
        %860 = vmatmul.mubr.f32.gmra.mrb[0].mxu0 %v793
        %v861 = vpop.f32.mrb[0].mxu0
        %v862 = vadd.f32 0.0, %v861
        %v863 = vpop.f32.mrb[0].mxu0
        %864 = vdwg.mxu0
        %v865 = vmul.f32 %v641, %v641
        %v866 = vmul.f32 %v714, %v714
        %v867 = vadd.f32 %v865, %v866
        %v868 = vmul.f32 %v789, %v789
        %v869 = vadd.f32 %v867, %v868
        %v870 = vmul.f32 %v862, %v862
        %v871 = vadd.f32 %v869, %v870
        %vm872 = vcmask 27648
        %873 = vst.msk [vmem:[%s313] sm:$0xf] %vm872, %v871
        %s874 = sand.u32 %s208, 1
        %s875 = scalar_lea.sflag [#allocation3], %s874
        %s876 = sand.u32 %s208, 1
        %s877 = smul.addr %s876, 4
        %s878 = scalar_lea.vmem [#allocation2], %s877
        // Predicated region
        $region53: #{tpu_custom_call.1} parent=51 // pred_check
          %p879 = pneg %p218
        $region54: #{tpu_custom_call.1} parent=51 // pred_check_branch
          %881 = sbr.rel (%p879) target = $region56
        $region55: #{tpu_custom_call.1} parent=51 // pred_region
          %s883 = ssub.s32 64, 64
          %884 = vsyncadd %s875, %s883
          %s885 = smul.addr %s22, 64
          %s886 = scalar_lea.hbm %s8, %s885
          %s888 = sshll.u32 %s878, 4
          %s889 = int_to_ptr.vmem [resolvable:$true] %s888
          %891 = dma.vmem_to_hbm [thread:$0]  %s889, 64, %s886, %s875
        $region56: #{tpu_custom_call.1} parent=51 // pred_fallthru
          _
      $region52: #{tpu_custom_call.1} parent=5 // pred_fallthru
        _
      %p892 = scmp.le.s32.totalorder 2, %s17
      // Predicated region
      $region57: #{tpu_custom_call.1} parent=5 // pred_check
        %p893 = pneg %p892
      $region58: #{tpu_custom_call.1} parent=5 // pred_check_branch
        %895 = sbr.rel (%p893) target = $region60
      $region59: #{tpu_custom_call.1} parent=5 // pred_region
        %s896 = ssub.s32 %s17, 2
        // Predicated region
        $region61: #{tpu_custom_call.1} parent=59 // pred_check
          %p897 = pneg %p224
        $region62: #{tpu_custom_call.1} parent=59 // pred_check_branch
          %899 = sbr.rel (%p897) target = $region64
        $region63: #{tpu_custom_call.1} parent=59 // pred_region
          %s900 = sand.u32 %s209, 1
          %s901 = scalar_lea.sflag [#allocation3], %s900
          %s902 = sand.u32 %s209, 1
          %s903 = smul.addr %s902, 4
          %s904 = scalar_lea.vmem [#allocation2], %s903
          %905 = dma.done %s901, 64
        $region64: #{tpu_custom_call.1} parent=59 // pred_fallthru
          _
      $region60: #{tpu_custom_call.1} parent=5 // pred_fallthru
        _
    $region6: #{tpu_custom_call.1} parent=1 // loop_footer
      %s21 = sadd.s32 1, %s17
    $region7: #{tpu_custom_call.1} parent=1 // loop_footer_branch
      %16 = sbr.rel target = $region3
    $region8: #{tpu_custom_call.1} parent=1 // loop_exit
      _
    %906 = vsyncpa [#allocation3], 1
    %s907 = scalar_lea.sflag [#allocation3], 1
    %908 = vsyncpa %s907, 1

// kernel: tpu_custom_call.1
$region0: #{tpu_custom_call.1}
  #allocation0 [shape = 'u32[]', space=smem, size = 0x4, offset = 0x4, fixed_abs, tag = 'smem constant byte address 0x4 - core index']
  #allocation1 [shape = 'u32[144,128]{1,0:T(1,128)}', space=vmem, size = 0x12000, scoped, tag = 'internal scratch']
  %s0 = inlined_call_operand.vmem [shape: f32[4,64], index: 0, kind: input, shape index: {}]
  %s1 = inlined_call_operand.vmem [shape: f32[16,4], index: 1, kind: input, shape index: {}]
  %s2 = inlined_call_operand.vmem [shape: f32[4,4], index: 2, kind: input, shape index: {}]
  %s3 = inlined_call_operand.vmem [shape: f32[4,4], index: 3, kind: input, shape index: {}]
  %s4 = inlined_call_operand.vmem [shape: f32[4,4], index: 4, kind: input, shape index: {}]
  %s5 = inlined_call_operand.vmem [shape: f32[4,4], index: 5, kind: input, shape index: {}]
  %s6 = inlined_call_operand.vmem [shape: f32[2,64,16], index: 6, kind: input, shape index: {}]
  %s7 = inlined_call_operand.vmem [shape: f32[2,64,16], index: 7, kind: input, shape index: {}]
  %s8 = inlined_call_operand.hbm [shape: f32[2,4,4], index: 8, kind: output, shape index: {}]
  %s9 = sld [smem:[#allocation0]]
  $region65: #{tpu_custom_call.1} parent=0
    _
  %s11 = ssub.s32 1, %s9
  %s12 = scalar_select 0, %s11, %s9
  $region1: #{tpu_custom_call.1} parent=0
    #allocation2 [shape = 'u8[4096]{0}', space=vmem, size = 0x1000, scoped, tag = 'output window, operand 0']
    #allocation3 [shape = 's32[2]{0}', space=sflag, size = 0x8, scoped, tag = 'scoped memory for tpu_custom_call.1']
    %13 = vsyncpa [#allocation3], 0
    %s14 = scalar_lea.sflag [#allocation3], 1
    %15 = vsyncpa %s14, 0
    loop: start=0, step=1, limit=4
    $region2: #{tpu_custom_call.1} parent=1 // loop_pre_header
      _
    $region3: #{tpu_custom_call.1} parent=1 // loop_header
      %s17 = sphi 0, %s21
      %p18 = scmp.ge.s32.totalorder %s17, 4
      %s25 = sphi 0, %s25
      %s27 = sphi 0, %s25
      %s28 = sphi 0, %s27
      %s42 = sphi 0, %s28
      %s46 = sphi 0, %s46
      %s48 = sphi 0, %s46
      %s49 = sphi 0, %s48
      %s63 = sphi 0, %s49
      %s67 = sphi 0, %s67
      %s69 = sphi 0, %s67
      %s70 = sphi 0, %s69
      %s84 = sphi 0, %s70
      %s88 = sphi 0, %s88
      %s90 = sphi 0, %s88
      %s91 = sphi 0, %s90
      %s105 = sphi 0, %s91
      %s109 = sphi 0, %s109
      %s111 = sphi 0, %s109
      %s112 = sphi 0, %s111
      %s126 = sphi 0, %s112
      %s130 = sphi 0, %s130
      %s132 = sphi 0, %s130
      %s133 = sphi 0, %s132
      %s147 = sphi 0, %s133
      %s153 = sphi 0, %s155
      %s156 = sphi 0, %s153
      %s157 = sphi 0, %s156
      %s173 = sphi 0, %s157
      %s179 = sphi 0, %s181
      %s182 = sphi 0, %s179
      %s183 = sphi 0, %s182
      %s199 = sphi 0, %s183
      %s205 = sphi 0, %s207
      %s208 = sphi 0, %s205
      %s209 = sphi 0, %s208
      %s225 = sphi 0, %s209
    $region4: #{tpu_custom_call.1} parent=1 // loop_header_branch
      %20 = sbr.rel (%p18) target = $region8
    $region5: #{tpu_custom_call.1} parent=1 // loop_body
      %s22 = ssub.s32 %s17, 1
      %s23 = ssub.s32 %s17, 2
      %s24 = sadd.s32 %s17, 1
      %s26 = sadd.s32 %s25, 1
      %p29 = scmp.eq.s32.totalorder %s17, 1
      %p30 = scmp.ne.s32.totalorder %s25, %s27
      %p31 = scmp.eq.s32.totalorder %s17, 0
      %p32 = por %p30, %p31
      %p33 = scmp.ne.s32.totalorder %s25, %s27
      %p34 = scmp.eq.s32.totalorder %s22, 1
      %p35 = por %p33, %p34
      %p36 = scmp.ne.s32.totalorder %s27, %s28
      %p37 = scmp.eq.s32.totalorder %s22, 0
      %p38 = por %p36, %p37
      %p39 = scmp.ne.s32.totalorder %s27, %s28
      %p40 = scmp.eq.s32.totalorder %s23, 1
      %p41 = por %p39, %p40
      %p43 = scmp.ne.s32.totalorder %s28, %s42
      %p44 = scmp.eq.s32.totalorder %s23, 0
      %p45 = por %p43, %p44
      %s47 = sadd.s32 %s46, 1
      %p50 = scmp.eq.s32.totalorder %s17, 1
      %p51 = scmp.ne.s32.totalorder %s46, %s48
      %p52 = scmp.eq.s32.totalorder %s17, 0
      %p53 = por %p51, %p52
      %p54 = scmp.ne.s32.totalorder %s46, %s48
      %p55 = scmp.eq.s32.totalorder %s22, 1
      %p56 = por %p54, %p55
      %p57 = scmp.ne.s32.totalorder %s48, %s49
      %p58 = scmp.eq.s32.totalorder %s22, 0
      %p59 = por %p57, %p58
      %p60 = scmp.ne.s32.totalorder %s48, %s49
      %p61 = scmp.eq.s32.totalorder %s23, 1
      %p62 = por %p60, %p61
      %p64 = scmp.ne.s32.totalorder %s49, %s63
      %p65 = scmp.eq.s32.totalorder %s23, 0
      %p66 = por %p64, %p65
      %s68 = sadd.s32 %s67, 1
      %p71 = scmp.eq.s32.totalorder %s17, 1
      %p72 = scmp.ne.s32.totalorder %s67, %s69
      %p73 = scmp.eq.s32.totalorder %s17, 0
      %p74 = por %p72, %p73
      %p75 = scmp.ne.s32.totalorder %s67, %s69
      %p76 = scmp.eq.s32.totalorder %s22, 1
      %p77 = por %p75, %p76
      %p78 = scmp.ne.s32.totalorder %s69, %s70
      %p79 = scmp.eq.s32.totalorder %s22, 0
      %p80 = por %p78, %p79
      %p81 = scmp.ne.s32.totalorder %s69, %s70
      %p82 = scmp.eq.s32.totalorder %s23, 1
      %p83 = por %p81, %p82
      %p85 = scmp.ne.s32.totalorder %s70, %s84
      %p86 = scmp.eq.s32.totalorder %s23, 0
      %p87 = por %p85, %p86
      %s89 = sadd.s32 %s88, 1
      %p92 = scmp.eq.s32.totalorder %s17, 1
      %p93 = scmp.ne.s32.totalorder %s88, %s90
      %p94 = scmp.eq.s32.totalorder %s17, 0
      %p95 = por %p93, %p94
      %p96 = scmp.ne.s32.totalorder %s88, %s90
      %p97 = scmp.eq.s32.totalorder %s22, 1
      %p98 = por %p96, %p97
      %p99 = scmp.ne.s32.totalorder %s90, %s91
      %p100 = scmp.eq.s32.totalorder %s22, 0
      %p101 = por %p99, %p100
      %p102 = scmp.ne.s32.totalorder %s90, %s91
      %p103 = scmp.eq.s32.totalorder %s23, 1
      %p104 = por %p102, %p103
      %p106 = scmp.ne.s32.totalorder %s91, %s105
      %p107 = scmp.eq.s32.totalorder %s23, 0
      %p108 = por %p106, %p107
      %s110 = sadd.s32 %s109, 1
      %p113 = scmp.eq.s32.totalorder %s17, 1
      %p114 = scmp.ne.s32.totalorder %s109, %s111
      %p115 = scmp.eq.s32.totalorder %s17, 0
      %p116 = por %p114, %p115
      %p117 = scmp.ne.s32.totalorder %s109, %s111
      %p118 = scmp.eq.s32.totalorder %s22, 1
      %p119 = por %p117, %p118
      %p120 = scmp.ne.s32.totalorder %s111, %s112
      %p121 = scmp.eq.s32.totalorder %s22, 0
      %p122 = por %p120, %p121
      %p123 = scmp.ne.s32.totalorder %s111, %s112
      %p124 = scmp.eq.s32.totalorder %s23, 1
      %p125 = por %p123, %p124
      %p127 = scmp.ne.s32.totalorder %s112, %s126
      %p128 = scmp.eq.s32.totalorder %s23, 0
      %p129 = por %p127, %p128
      %s131 = sadd.s32 %s130, 1
      %p134 = scmp.eq.s32.totalorder %s17, 1
      %p135 = scmp.ne.s32.totalorder %s130, %s132
      %p136 = scmp.eq.s32.totalorder %s17, 0
      %p137 = por %p135, %p136
      %p138 = scmp.ne.s32.totalorder %s130, %s132
      %p139 = scmp.eq.s32.totalorder %s22, 1
      %p140 = por %p138, %p139
      %p141 = scmp.ne.s32.totalorder %s132, %s133
      %p142 = scmp.eq.s32.totalorder %s22, 0
      %p143 = por %p141, %p142
      %p144 = scmp.ne.s32.totalorder %s132, %s133
      %p145 = scmp.eq.s32.totalorder %s23, 1
      %p146 = por %p144, %p145
      %p148 = scmp.ne.s32.totalorder %s133, %s147
      %p149 = scmp.eq.s32.totalorder %s23, 0
      %p150 = por %p148, %p149
      %s151 = ssub.s32 %s17, %s24
      %p152 = scmp.eq.s32.totalorder %s151, 0
      %s154 = sadd.s32 %s153, 1
      %s155 = scalar_select %p152, %s153, %s154
      %p158 = pneg %p152
      %p159 = scmp.eq.s32.totalorder %s17, 1
      %p160 = por %p158, %p159
      %p161 = scmp.ne.s32.totalorder %s153, %s156
      %p162 = scmp.eq.s32.totalorder %s17, 0
      %p163 = por %p161, %p162
      %p164 = scmp.ne.s32.totalorder %s153, %s156
      %p165 = scmp.eq.s32.totalorder %s22, 1
      %p166 = por %p164, %p165
      %p167 = scmp.ne.s32.totalorder %s156, %s157
      %p168 = scmp.eq.s32.totalorder %s22, 0
      %p169 = por %p167, %p168
      %p170 = scmp.ne.s32.totalorder %s156, %s157
      %p171 = scmp.eq.s32.totalorder %s23, 1
      %p172 = por %p170, %p171
      %p174 = scmp.ne.s32.totalorder %s157, %s173
      %p175 = scmp.eq.s32.totalorder %s23, 0
      %p176 = por %p174, %p175
      %s177 = ssub.s32 %s17, %s24
      %p178 = scmp.eq.s32.totalorder %s177, 0
      %s180 = sadd.s32 %s179, 1
      %s181 = scalar_select %p178, %s179, %s180
      %p184 = pneg %p178
      %p185 = scmp.eq.s32.totalorder %s17, 1
      %p186 = por %p184, %p185
      %p187 = scmp.ne.s32.totalorder %s179, %s182
      %p188 = scmp.eq.s32.totalorder %s17, 0
      %p189 = por %p187, %p188
      %p190 = scmp.ne.s32.totalorder %s179, %s182
      %p191 = scmp.eq.s32.totalorder %s22, 1
      %p192 = por %p190, %p191
      %p193 = scmp.ne.s32.totalorder %s182, %s183
      %p194 = scmp.eq.s32.totalorder %s22, 0
      %p195 = por %p193, %p194
      %p196 = scmp.ne.s32.totalorder %s182, %s183
      %p197 = scmp.eq.s32.totalorder %s23, 1
      %p198 = por %p196, %p197
      %p200 = scmp.ne.s32.totalorder %s183, %s199
      %p201 = scmp.eq.s32.totalorder %s23, 0
      %p202 = por %p200, %p201
      %s203 = ssub.s32 %s17, %s24
      %p204 = scmp.eq.s32.totalorder %s203, 0
      %s206 = sadd.s32 %s205, 1
      %s207 = scalar_select %p204, %s205, %s206
      %p210 = pneg %p204
      %p211 = scmp.eq.s32.totalorder %s17, 1
      %p212 = por %p210, %p211
      %p213 = scmp.ne.s32.totalorder %s205, %s208
      %p214 = scmp.eq.s32.totalorder %s17, 0
      %p215 = por %p213, %p214
      %p216 = scmp.ne.s32.totalorder %s205, %s208
      %p217 = scmp.eq.s32.totalorder %s22, 1
      %p218 = por %p216, %p217
      %p219 = scmp.ne.s32.totalorder %s208, %s209
      %p220 = scmp.eq.s32.totalorder %s22, 0
      %p221 = por %p219, %p220
      %p222 = scmp.ne.s32.totalorder %s208, %s209
      %p223 = scmp.eq.s32.totalorder %s23, 1
      %p224 = por %p222, %p223
      %p226 = scmp.ne.s32.totalorder %s209, %s225
      %p227 = scmp.eq.s32.totalorder %s23, 0
      %p228 = por %p226, %p227
      %p229 = scmp.le.s32.totalorder 1, %s17
      %p230 = scmp.lt.s32.totalorder %s17, 3
      %p231 = pnand %p229, %p230
      %p232 = pneg %p231
      // Predicated region
      $region9: #{tpu_custom_call.1} parent=5 // pred_check
        _
      $region10: #{tpu_custom_call.1} parent=5 // pred_check_branch
        %234 = sbr.rel (%p231) target = $region12
      $region11: #{tpu_custom_call.1} parent=5 // pred_region
        %s235 = ssub.s32 %s17, 1
        // Predicated region
        $region13: #{tpu_custom_call.1} parent=11 // pred_check
          %p236 = pneg %p38
        $region14: #{tpu_custom_call.1} parent=11 // pred_check_branch
          %238 = sbr.rel (%p236) target = $region16
        $region15: #{tpu_custom_call.1} parent=11 // pred_region
          _
        $region16: #{tpu_custom_call.1} parent=11 // pred_fallthru
          _
        // Predicated region
        $region17: #{tpu_custom_call.1} parent=11 // pred_check
          %p239 = pneg %p59
        $region18: #{tpu_custom_call.1} parent=11 // pred_check_branch
          %241 = sbr.rel (%p239) target = $region20
        $region19: #{tpu_custom_call.1} parent=11 // pred_region
          _
        $region20: #{tpu_custom_call.1} parent=11 // pred_fallthru
          _
        // Predicated region
        $region21: #{tpu_custom_call.1} parent=11 // pred_check
          %p242 = pneg %p80
        $region22: #{tpu_custom_call.1} parent=11 // pred_check_branch
          %244 = sbr.rel (%p242) target = $region24
        $region23: #{tpu_custom_call.1} parent=11 // pred_region
          _
        $region24: #{tpu_custom_call.1} parent=11 // pred_fallthru
          _
        // Predicated region
        $region25: #{tpu_custom_call.1} parent=11 // pred_check
          %p245 = pneg %p101
        $region26: #{tpu_custom_call.1} parent=11 // pred_check_branch
          %247 = sbr.rel (%p245) target = $region28
        $region27: #{tpu_custom_call.1} parent=11 // pred_region
          _
        $region28: #{tpu_custom_call.1} parent=11 // pred_fallthru
          _
        // Predicated region
        $region29: #{tpu_custom_call.1} parent=11 // pred_check
          %p248 = pneg %p122
        $region30: #{tpu_custom_call.1} parent=11 // pred_check_branch
          %250 = sbr.rel (%p248) target = $region32
        $region31: #{tpu_custom_call.1} parent=11 // pred_region
          _
        $region32: #{tpu_custom_call.1} parent=11 // pred_fallthru
          _
        // Predicated region
        $region33: #{tpu_custom_call.1} parent=11 // pred_check
          %p251 = pneg %p143
        $region34: #{tpu_custom_call.1} parent=11 // pred_check_branch
          %253 = sbr.rel (%p251) target = $region36
        $region35: #{tpu_custom_call.1} parent=11 // pred_region
          _
        $region36: #{tpu_custom_call.1} parent=11 // pred_fallthru
          _
      $region12: #{tpu_custom_call.1} parent=5 // pred_fallthru
        _
      %p254 = scmp.lt.s32.totalorder %s17, 2
      // Predicated region
      $region37: #{tpu_custom_call.1} parent=5 // pred_check
        %p255 = pneg %p254
      $region38: #{tpu_custom_call.1} parent=5 // pred_check_branch
        %257 = sbr.rel (%p255) target = $region40
      $region39: #{tpu_custom_call.1} parent=5 // pred_region
        // Predicated region
        $region41: #{tpu_custom_call.1} parent=39 // pred_check
          %p258 = pneg %p163
        $region42: #{tpu_custom_call.1} parent=39 // pred_check_branch
          %260 = sbr.rel (%p258) target = $region44
        $region43: #{tpu_custom_call.1} parent=39 // pred_region
          %p261 = scmp.lt.s32.totalorder %s17, 1
          %s262 = scalar_select %p261, %s17, 1
          %s263 = smul.addr %s262, 8
          %s264 = smul.addr %s263, 8
          %s265 = scalar_lea.vmem %s6, %s264
        $region44: #{tpu_custom_call.1} parent=39 // pred_fallthru
          _
        // Predicated region
        $region45: #{tpu_custom_call.1} parent=39 // pred_check
          %p266 = pneg %p189
        $region46: #{tpu_custom_call.1} parent=39 // pred_check_branch
          %268 = sbr.rel (%p266) target = $region48
        $region47: #{tpu_custom_call.1} parent=39 // pred_region
          %p269 = scmp.lt.s32.totalorder %s17, 1
          %s270 = scalar_select %p269, %s17, 1
          %s271 = smul.addr %s270, 8
          %s272 = smul.addr %s271, 8
          %s273 = scalar_lea.vmem %s7, %s272
        $region48: #{tpu_custom_call.1} parent=39 // pred_fallthru
          _
      $region40: #{tpu_custom_call.1} parent=5 // pred_fallthru
        _
      %p274 = scmp.le.s32.totalorder 1, %s17
      %p275 = scmp.lt.s32.totalorder %s17, 3
      %p276 = pnand %p274, %p275
      %p277 = pneg %p276
      // Predicated region
      $region49: #{tpu_custom_call.1} parent=5 // pred_check
        _
      $region50: #{tpu_custom_call.1} parent=5 // pred_check_branch
        %279 = sbr.rel (%p276) target = $region52
      $region51: #{tpu_custom_call.1} parent=5 // pred_region
        %s280 = ssub.s32 %s17, 1
        %p281 = pneg %p38
        %p282 = pneg %p35
        %p283 = pneg %p59
        %p284 = pneg %p56
        %p285 = pneg %p80
        %p286 = pneg %p77
        %p287 = pneg %p101
        %p288 = pneg %p98
        %p289 = pneg %p122
        %p290 = pneg %p119
        %p291 = pneg %p143
        %p292 = pneg %p140
        %p293 = scmp.lt.s32.totalorder %s22, 1
        %s294 = scalar_select %p293, %s22, 1
        %s295 = smul.addr %s294, 8
        %s296 = smul.addr %s295, 8
        %s297 = scalar_lea.vmem %s6, %s296
        %p298 = pneg %p169
        %p299 = pneg %p166
        %p300 = scmp.lt.s32.totalorder %s22, 1
        %s301 = scalar_select %p300, %s22, 1
        %s302 = smul.addr %s301, 8
        %s303 = smul.addr %s302, 8
        %s304 = scalar_lea.vmem %s7, %s303
        %p305 = pneg %p195
        %p306 = pneg %p192
        %p307 = pneg %p221
        %p308 = pneg %p218
        %s309 = sand.u32 %s208, 1
        %s310 = scalar_lea.sflag [#allocation3], %s309
        %s311 = sand.u32 %s208, 1
        %s312 = smul.addr %s311, 4
        %s313 = scalar_lea.vmem [#allocation2], %s312
        %p314 = scmp.lt.s32.totalorder %s22, 1
        %s315 = scalar_select %p314, %s22, 1
        %s316 = smul.addr %s315, 8
        %s317 = smul.addr %s316, 8
        %s318 = scalar_lea.vmem %s6, %s317
        %p319 = scmp.lt.s32.totalorder %s22, 1
        %s320 = scalar_select %p319, %s22, 1
        %s321 = smul.addr %s320, 8
        %s322 = smul.addr %s321, 8
        %s323 = scalar_lea.vmem %s7, %s322
        %v324 = vld [vmem:[%s0] sm:$0xf]
        %v325 = vld [vmem:[%s1] sm:$0xff]
        %v326 = vld [vmem:[%s1 + $0x8] sm:$0xff]
        %v327 = vld [vmem:[%s2] sm:$0xf]
        %v328 = vld [vmem:[%s3] sm:$0xf]
        %v329 = vld [vmem:[%s4] sm:$0xf]
        %v330 = vld [vmem:[%s5] sm:$0xf]
        %v331 = vld [vmem:[%s318] sm:$0xff]
        %v332 = vld [vmem:[%s318 + $0x8] sm:$0xff]
        %v333 = vld [vmem:[%s318 + $0x10] sm:$0xff]
        %v334 = vld [vmem:[%s318 + $0x18] sm:$0xff]
        %v335 = vld [vmem:[%s318 + $0x20] sm:$0xff]
        %v336 = vld [vmem:[%s318 + $0x28] sm:$0xff]
        %v337 = vld [vmem:[%s318 + $0x30] sm:$0xff]
        %v338 = vld [vmem:[%s318 + $0x38] sm:$0xff]
        %vm339 = vcmask 523264
        %v341 = vsel %vm339, %v324, 0
        %343 = vmatprep.subr.mxu0 0.0
        %344 = vmatpush1.msra.mxu0 %v331
        %345 = vmatprep.subr.mxu0 0.0
        %346 = vmatpush1.msra.mxu0 %v332
        %347 = vmatprep.subr.mxu0 0.0
        %348 = vmatpush1.msra.mxu0 %v333
        %349 = vmatprep.subr.mxu0 0.0
        %350 = vmatpush1.msra.mxu0 %v334
        %351 = vmatprep.subr.mxu0 0.0
        %352 = vmatpush1.msra.mxu0 %v335
        %353 = vmatprep.subr.mxu0 0.0
        %354 = vmatpush1.msra.mxu0 %v336
        %355 = vmatprep.subr.mxu0 0.0
        %356 = vmatpush1.msra.mxu0 %v337
        %357 = vmatprep.subr.mxu0 0.0
        %358 = vmatpush1.msra.mxu0 %v338
        %359 = vmatprep.subr.mxu0 0.0
        %360 = vmatpush1.msra.mxu0 0.0
        %361 = vmatprep.subr.mxu0 0.0
        %362 = vmatpush1.msra.mxu0 0.0
        %363 = vmatprep.subr.mxu0 0.0
        %364 = vmatpush1.msra.mxu0 0.0
        %365 = vmatprep.subr.mxu0 0.0
        %366 = vmatpush1.msra.mxu0 0.0
        %367 = vmatprep.subr.mxu0 0.0
        %368 = vmatpush1.msra.mxu0 0.0
        %369 = vmatprep.subr.mxu0 0.0
        %370 = vmatpush1.msra.mxu0 0.0
        %371 = vmatprep.subr.mxu0 0.0
        %372 = vmatpush1.msra.mxu0 0.0
        %373 = vmatprep.subr.mxu0 0.0
        %374 = vmatpush1.msra.mxu0 0.0
        %375 = vmatprep.subr.mxu0 0.0
        %376 = vmatpush1.msra.mxu0 0.0
        %377 = vmatprep.subr.mxu0 0.0
        %378 = vmatpush1.msra.mxu0 0.0
        %379 = vmatprep.subr.mxu0 0.0
        %380 = vmatpush1.msra.mxu0 0.0
        %381 = vmatprep.subr.mxu0 0.0
        %382 = vmatpush1.msra.mxu0 0.0
        %383 = vmatprep.subr.mxu0 0.0
        %384 = vmatpush1.msra.mxu0 0.0
        %385 = vmatprep.subr.mxu0 0.0
        %386 = vmatpush1.msra.mxu0 0.0
        %387 = vmatprep.subr.mxu0 0.0
        %388 = vmatpush1.msra.mxu0 0.0
        %389 = vmatprep.subr.mxu0 0.0
        %390 = vmatpush1.msra.mxu0 0.0
        %391 = vmatprep.subr.mxu0 0.0
        %392 = vmatpush1.msra.mxu0 0.0
        %393 = vmatprep.subr.mxu0 0.0
        %394 = vmatpush1.msra.mxu0 0.0
        %395 = vmatprep.subr.mxu0 0.0
        %396 = vmatpush1.msra.mxu0 0.0
        %397 = vmatprep.subr.mxu0 0.0
        %398 = vmatpush1.msra.mxu0 0.0
        %399 = vmatprep.subr.mxu0 0.0
        %400 = vmatpush1.msra.mxu0 0.0
        %401 = vmatprep.subr.mxu0 0.0
        %402 = vmatpush1.msra.mxu0 0.0
        %403 = vmatprep.subr.mxu0 0.0
        %404 = vmatpush1.msra.mxu0 0.0
        %405 = vmatprep.subr.mxu0 0.0
        %406 = vmatpush1.msra.mxu0 0.0
        %407 = vmatprep.mubr.f32.mxu0 0.0
        %408 = vmatmul.mubr.f32.gmra.mrb[0].mxu0 %v341
        %v409 = vpop.f32.mrb[0].mxu0
        %v410 = vadd.f32 0.0, %v409
        %v411 = vpop.f32.mrb[0].mxu0
        %412 = vdwg.mxu0
        %v413 = vld [vmem:[%s323] sm:$0xff]
        %v414 = vld [vmem:[%s323 + $0x8] sm:$0xff]
        %v415 = vld [vmem:[%s323 + $0x10] sm:$0xff]
        %v416 = vld [vmem:[%s323 + $0x18] sm:$0xff]
        %v417 = vld [vmem:[%s323 + $0x20] sm:$0xff]
        %v418 = vld [vmem:[%s323 + $0x28] sm:$0xff]
        %v419 = vld [vmem:[%s323 + $0x30] sm:$0xff]
        %v420 = vld [vmem:[%s323 + $0x38] sm:$0xff]
        %421 = vmatprep.subr.mxu0 0.0
        %422 = vmatpush1.msra.mxu0 %v413
        %423 = vmatprep.subr.mxu0 0.0
        %424 = vmatpush1.msra.mxu0 %v414
        %425 = vmatprep.subr.mxu0 0.0
        %426 = vmatpush1.msra.mxu0 %v415
        %427 = vmatprep.subr.mxu0 0.0
        %428 = vmatpush1.msra.mxu0 %v416
        %429 = vmatprep.subr.mxu0 0.0
        %430 = vmatpush1.msra.mxu0 %v417
        %431 = vmatprep.subr.mxu0 0.0
        %432 = vmatpush1.msra.mxu0 %v418
        %433 = vmatprep.subr.mxu0 0.0
        %434 = vmatpush1.msra.mxu0 %v419
        %435 = vmatprep.subr.mxu0 0.0
        %436 = vmatpush1.msra.mxu0 %v420
        %437 = vmatprep.subr.mxu0 0.0
        %438 = vmatpush1.msra.mxu0 0.0
        %439 = vmatprep.subr.mxu0 0.0
        %440 = vmatpush1.msra.mxu0 0.0
        %441 = vmatprep.subr.mxu0 0.0
        %442 = vmatpush1.msra.mxu0 0.0
        %443 = vmatprep.subr.mxu0 0.0
        %444 = vmatpush1.msra.mxu0 0.0
        %445 = vmatprep.subr.mxu0 0.0
        %446 = vmatpush1.msra.mxu0 0.0
        %447 = vmatprep.subr.mxu0 0.0
        %448 = vmatpush1.msra.mxu0 0.0
        %449 = vmatprep.subr.mxu0 0.0
        %450 = vmatpush1.msra.mxu0 0.0
        %451 = vmatprep.subr.mxu0 0.0
        %452 = vmatpush1.msra.mxu0 0.0
        %453 = vmatprep.subr.mxu0 0.0
        %454 = vmatpush1.msra.mxu0 0.0
        %455 = vmatprep.subr.mxu0 0.0
        %456 = vmatpush1.msra.mxu0 0.0
        %457 = vmatprep.subr.mxu0 0.0
        %458 = vmatpush1.msra.mxu0 0.0
        %459 = vmatprep.subr.mxu0 0.0
        %460 = vmatpush1.msra.mxu0 0.0
        %461 = vmatprep.subr.mxu0 0.0
        %462 = vmatpush1.msra.mxu0 0.0
        %463 = vmatprep.subr.mxu0 0.0
        %464 = vmatpush1.msra.mxu0 0.0
        %465 = vmatprep.subr.mxu0 0.0
        %466 = vmatpush1.msra.mxu0 0.0
        %467 = vmatprep.subr.mxu0 0.0
        %468 = vmatpush1.msra.mxu0 0.0
        %469 = vmatprep.subr.mxu0 0.0
        %470 = vmatpush1.msra.mxu0 0.0
        %471 = vmatprep.subr.mxu0 0.0
        %472 = vmatpush1.msra.mxu0 0.0
        %473 = vmatprep.subr.mxu0 0.0
        %474 = vmatpush1.msra.mxu0 0.0
        %475 = vmatprep.subr.mxu0 0.0
        %476 = vmatpush1.msra.mxu0 0.0
        %477 = vmatprep.subr.mxu0 0.0
        %478 = vmatpush1.msra.mxu0 0.0
        %479 = vmatprep.subr.mxu0 0.0
        %480 = vmatpush1.msra.mxu0 0.0
        %481 = vmatprep.subr.mxu0 0.0
        %482 = vmatpush1.msra.mxu0 0.0
        %483 = vmatprep.subr.mxu0 0.0
        %484 = vmatpush1.msra.mxu0 0.0
        %485 = vmatprep.mubr.f32.mxu0 0.0
        %486 = vmatmul.mubr.f32.gmra.mrb[0].mxu0 %v341
        %v487 = vpop.f32.mrb[0].mxu0
        %v488 = vadd.f32 0.0, %v487
        %v489 = vpop.f32.mrb[0].mxu0
        %490 = vdwg.mxu0
        %v491 = vsub.f32 %v410, %v488
        %vm492 = vcmask 130048
        %v494 = vsel %vm492, %v491, 0
        %496 = vmatprep.subr.mxu0 0.0
        %497 = vmatpush1.msra.mxu0 %v325
        %498 = vmatprep.subr.mxu0 0.0
        %499 = vmatpush1.msra.mxu0 %v326
        %500 = vmatprep.subr.mxu0 0.0
        %501 = vmatpush1.msra.mxu0 0.0
        %502 = vmatprep.subr.mxu0 0.0
        %503 = vmatpush1.msra.mxu0 0.0
        %504 = vmatprep.subr.mxu0 0.0
        %505 = vmatpush1.msra.mxu0 0.0
        %506 = vmatprep.subr.mxu0 0.0
        %507 = vmatpush1.msra.mxu0 0.0
        %508 = vmatprep.subr.mxu0 0.0
        %509 = vmatpush1.msra.mxu0 0.0
        %510 = vmatprep.subr.mxu0 0.0
        %511 = vmatpush1.msra.mxu0 0.0
        %512 = vmatprep.subr.mxu0 0.0
        %513 = vmatpush1.msra.mxu0 0.0
        %514 = vmatprep.subr.mxu0 0.0
        %515 = vmatpush1.msra.mxu0 0.0
        %516 = vmatprep.subr.mxu0 0.0
        %517 = vmatpush1.msra.mxu0 0.0
        %518 = vmatprep.subr.mxu0 0.0
        %519 = vmatpush1.msra.mxu0 0.0
        %520 = vmatprep.subr.mxu0 0.0
        %521 = vmatpush1.msra.mxu0 0.0
        %522 = vmatprep.subr.mxu0 0.0
        %523 = vmatpush1.msra.mxu0 0.0
        %524 = vmatprep.subr.mxu0 0.0
        %525 = vmatpush1.msra.mxu0 0.0
        %526 = vmatprep.subr.mxu0 0.0
        %527 = vmatpush1.msra.mxu0 0.0
        %528 = vmatprep.subr.mxu0 0.0
        %529 = vmatpush1.msra.mxu0 0.0
        %530 = vmatprep.subr.mxu0 0.0
        %531 = vmatpush1.msra.mxu0 0.0
        %532 = vmatprep.subr.mxu0 0.0
        %533 = vmatpush1.msra.mxu0 0.0
        %534 = vmatprep.subr.mxu0 0.0
        %535 = vmatpush1.msra.mxu0 0.0
        %536 = vmatprep.subr.mxu0 0.0
        %537 = vmatpush1.msra.mxu0 0.0
        %538 = vmatprep.subr.mxu0 0.0
        %539 = vmatpush1.msra.mxu0 0.0
        %540 = vmatprep.subr.mxu0 0.0
        %541 = vmatpush1.msra.mxu0 0.0
        %542 = vmatprep.subr.mxu0 0.0
        %543 = vmatpush1.msra.mxu0 0.0
        %544 = vmatprep.subr.mxu0 0.0
        %545 = vmatpush1.msra.mxu0 0.0
        %546 = vmatprep.subr.mxu0 0.0
        %547 = vmatpush1.msra.mxu0 0.0
        %548 = vmatprep.subr.mxu0 0.0
        %549 = vmatpush1.msra.mxu0 0.0
        %550 = vmatprep.subr.mxu0 0.0
        %551 = vmatpush1.msra.mxu0 0.0
        %552 = vmatprep.subr.mxu0 0.0
        %553 = vmatpush1.msra.mxu0 0.0
        %554 = vmatprep.subr.mxu0 0.0
        %555 = vmatpush1.msra.mxu0 0.0
        %556 = vmatprep.subr.mxu0 0.0
        %557 = vmatpush1.msra.mxu0 0.0
        %558 = vmatprep.subr.mxu0 0.0
        %559 = vmatpush1.msra.mxu0 0.0
        %560 = vmatprep.mubr.f32.mxu0 0.0
        %561 = vmatmul.mubr.f32.gmra.mrb[0].mxu0 %v494
        %v562 = vpop.f32.mrb[0].mxu0
        %v563 = vadd.f32 0.0, %v562
        %v564 = vpop.f32.mrb[0].mxu0
        %565 = vdwg.mxu0
        %vm566 = vcmask 31744
        %v568 = vsel %vm566, %v563, 0
        %vm570 = vcmask 1043456
        %v572 = vsel %vm570, %v327, 0
        %574 = vmatprep.subr.mxu0 0.0
        %575 = vmatpush1.msra.mxu0 %v572
        %576 = vmatprep.subr.mxu0 0.0
        %577 = vmatpush1.msra.mxu0 0.0
        %578 = vmatprep.subr.mxu0 0.0
        %579 = vmatpush1.msra.mxu0 0.0
        %580 = vmatprep.subr.mxu0 0.0
        %581 = vmatpush1.msra.mxu0 0.0
        %582 = vmatprep.subr.mxu0 0.0
        %583 = vmatpush1.msra.mxu0 0.0
        %584 = vmatprep.subr.mxu0 0.0
        %585 = vmatpush1.msra.mxu0 0.0
        %586 = vmatprep.subr.mxu0 0.0
        %587 = vmatpush1.msra.mxu0 0.0
        %588 = vmatprep.subr.mxu0 0.0
        %589 = vmatpush1.msra.mxu0 0.0
        %590 = vmatprep.subr.mxu0 0.0
        %591 = vmatpush1.msra.mxu0 0.0
        %592 = vmatprep.subr.mxu0 0.0
        %593 = vmatpush1.msra.mxu0 0.0
        %594 = vmatprep.subr.mxu0 0.0
        %595 = vmatpush1.msra.mxu0 0.0
        %596 = vmatprep.subr.mxu0 0.0
        %597 = vmatpush1.msra.mxu0 0.0
        %598 = vmatprep.subr.mxu0 0.0
        %599 = vmatpush1.msra.mxu0 0.0
        %600 = vmatprep.subr.mxu0 0.0
        %601 = vmatpush1.msra.mxu0 0.0
        %602 = vmatprep.subr.mxu0 0.0
        %603 = vmatpush1.msra.mxu0 0.0
        %604 = vmatprep.subr.mxu0 0.0
        %605 = vmatpush1.msra.mxu0 0.0
        %606 = vmatprep.subr.mxu0 0.0
        %607 = vmatpush1.msra.mxu0 0.0
        %608 = vmatprep.subr.mxu0 0.0
        %609 = vmatpush1.msra.mxu0 0.0
        %610 = vmatprep.subr.mxu0 0.0
        %611 = vmatpush1.msra.mxu0 0.0
        %612 = vmatprep.subr.mxu0 0.0
        %613 = vmatpush1.msra.mxu0 0.0
        %614 = vmatprep.subr.mxu0 0.0
        %615 = vmatpush1.msra.mxu0 0.0
        %616 = vmatprep.subr.mxu0 0.0
        %617 = vmatpush1.msra.mxu0 0.0
        %618 = vmatprep.subr.mxu0 0.0
        %619 = vmatpush1.msra.mxu0 0.0
        %620 = vmatprep.subr.mxu0 0.0
        %621 = vmatpush1.msra.mxu0 0.0
        %622 = vmatprep.subr.mxu0 0.0
        %623 = vmatpush1.msra.mxu0 0.0
        %624 = vmatprep.subr.mxu0 0.0
        %625 = vmatpush1.msra.mxu0 0.0
        %626 = vmatprep.subr.mxu0 0.0
        %627 = vmatpush1.msra.mxu0 0.0
        %628 = vmatprep.subr.mxu0 0.0
        %629 = vmatpush1.msra.mxu0 0.0
        %630 = vmatprep.subr.mxu0 0.0
        %631 = vmatpush1.msra.mxu0 0.0
        %632 = vmatprep.subr.mxu0 0.0
        %633 = vmatpush1.msra.mxu0 0.0
        %634 = vmatprep.subr.mxu0 0.0
        %635 = vmatpush1.msra.mxu0 0.0
        %636 = vmatprep.subr.mxu0 0.0
        %637 = vmatpush1.msra.mxu0 0.0
        %638 = vmatprep.mubr.f32.mxu0 0.0
        %639 = vmatmul.mubr.f32.gmra.mrb[0].mxu0 %v568
        %v640 = vpop.f32.mrb[0].mxu0
        %v641 = vadd.f32 0.0, %v640
        %v642 = vpop.f32.mrb[0].mxu0
        %643 = vdwg.mxu0
        %v645 = vsel %vm570, %v328, 0
        %647 = vmatprep.subr.mxu0 0.0
        %648 = vmatpush1.msra.mxu0 %v645
        %649 = vmatprep.subr.mxu0 0.0
        %650 = vmatpush1.msra.mxu0 0.0
        %651 = vmatprep.subr.mxu0 0.0
        %652 = vmatpush1.msra.mxu0 0.0
        %653 = vmatprep.subr.mxu0 0.0
        %654 = vmatpush1.msra.mxu0 0.0
        %655 = vmatprep.subr.mxu0 0.0
        %656 = vmatpush1.msra.mxu0 0.0
        %657 = vmatprep.subr.mxu0 0.0
        %658 = vmatpush1.msra.mxu0 0.0
        %659 = vmatprep.subr.mxu0 0.0
        %660 = vmatpush1.msra.mxu0 0.0
        %661 = vmatprep.subr.mxu0 0.0
        %662 = vmatpush1.msra.mxu0 0.0
        %663 = vmatprep.subr.mxu0 0.0
        %664 = vmatpush1.msra.mxu0 0.0
        %665 = vmatprep.subr.mxu0 0.0
        %666 = vmatpush1.msra.mxu0 0.0
        %667 = vmatprep.subr.mxu0 0.0
        %668 = vmatpush1.msra.mxu0 0.0
        %669 = vmatprep.subr.mxu0 0.0
        %670 = vmatpush1.msra.mxu0 0.0
        %671 = vmatprep.subr.mxu0 0.0
        %672 = vmatpush1.msra.mxu0 0.0
        %673 = vmatprep.subr.mxu0 0.0
        %674 = vmatpush1.msra.mxu0 0.0
        %675 = vmatprep.subr.mxu0 0.0
        %676 = vmatpush1.msra.mxu0 0.0
        %677 = vmatprep.subr.mxu0 0.0
        %678 = vmatpush1.msra.mxu0 0.0
        %679 = vmatprep.subr.mxu0 0.0
        %680 = vmatpush1.msra.mxu0 0.0
        %681 = vmatprep.subr.mxu0 0.0
        %682 = vmatpush1.msra.mxu0 0.0
        %683 = vmatprep.subr.mxu0 0.0
        %684 = vmatpush1.msra.mxu0 0.0
        %685 = vmatprep.subr.mxu0 0.0
        %686 = vmatpush1.msra.mxu0 0.0
        %687 = vmatprep.subr.mxu0 0.0
        %688 = vmatpush1.msra.mxu0 0.0
        %689 = vmatprep.subr.mxu0 0.0
        %690 = vmatpush1.msra.mxu0 0.0
        %691 = vmatprep.subr.mxu0 0.0
        %692 = vmatpush1.msra.mxu0 0.0
        %693 = vmatprep.subr.mxu0 0.0
        %694 = vmatpush1.msra.mxu0 0.0
        %695 = vmatprep.subr.mxu0 0.0
        %696 = vmatpush1.msra.mxu0 0.0
        %697 = vmatprep.subr.mxu0 0.0
        %698 = vmatpush1.msra.mxu0 0.0
        %699 = vmatprep.subr.mxu0 0.0
        %700 = vmatpush1.msra.mxu0 0.0
        %701 = vmatprep.subr.mxu0 0.0
        %702 = vmatpush1.msra.mxu0 0.0
        %703 = vmatprep.subr.mxu0 0.0
        %704 = vmatpush1.msra.mxu0 0.0
        %705 = vmatprep.subr.mxu0 0.0
        %706 = vmatpush1.msra.mxu0 0.0
        %707 = vmatprep.subr.mxu0 0.0
        %708 = vmatpush1.msra.mxu0 0.0
        %709 = vmatprep.subr.mxu0 0.0
        %710 = vmatpush1.msra.mxu0 0.0
        %711 = vmatprep.mubr.f32.mxu0 0.0
        %712 = vmatmul.mubr.f32.gmra.mrb[0].mxu0 %v568
        %v713 = vpop.f32.mrb[0].mxu0
        %v714 = vadd.f32 0.0, %v713
        %v715 = vpop.f32.mrb[0].mxu0
        %716 = vdwg.mxu0
        %v718 = vsel %vm566, %v329, 0
        %v720 = vsel %vm570, %v563, 0
        %722 = vmatprep.subr.mxu0 0.0
        %723 = vmatpush1.msra.mxu0 %v720
        %724 = vmatprep.subr.mxu0 0.0
        %725 = vmatpush1.msra.mxu0 0.0
        %726 = vmatprep.subr.mxu0 0.0
        %727 = vmatpush1.msra.mxu0 0.0
        %728 = vmatprep.subr.mxu0 0.0
        %729 = vmatpush1.msra.mxu0 0.0
        %730 = vmatprep.subr.mxu0 0.0
        %731 = vmatpush1.msra.mxu0 0.0
        %732 = vmatprep.subr.mxu0 0.0
        %733 = vmatpush1.msra.mxu0 0.0
        %734 = vmatprep.subr.mxu0 0.0
        %735 = vmatpush1.msra.mxu0 0.0
        %736 = vmatprep.subr.mxu0 0.0
        %737 = vmatpush1.msra.mxu0 0.0
        %738 = vmatprep.subr.mxu0 0.0
        %739 = vmatpush1.msra.mxu0 0.0
        %740 = vmatprep.subr.mxu0 0.0
        %741 = vmatpush1.msra.mxu0 0.0
        %742 = vmatprep.subr.mxu0 0.0
        %743 = vmatpush1.msra.mxu0 0.0
        %744 = vmatprep.subr.mxu0 0.0
        %745 = vmatpush1.msra.mxu0 0.0
        %746 = vmatprep.subr.mxu0 0.0
        %747 = vmatpush1.msra.mxu0 0.0
        %748 = vmatprep.subr.mxu0 0.0
        %749 = vmatpush1.msra.mxu0 0.0
        %750 = vmatprep.subr.mxu0 0.0
        %751 = vmatpush1.msra.mxu0 0.0
        %752 = vmatprep.subr.mxu0 0.0
        %753 = vmatpush1.msra.mxu0 0.0
        %754 = vmatprep.subr.mxu0 0.0
        %755 = vmatpush1.msra.mxu0 0.0
        %756 = vmatprep.subr.mxu0 0.0
        %757 = vmatpush1.msra.mxu0 0.0
        %758 = vmatprep.subr.mxu0 0.0
        %759 = vmatpush1.msra.mxu0 0.0
        %760 = vmatprep.subr.mxu0 0.0
        %761 = vmatpush1.msra.mxu0 0.0
        %762 = vmatprep.subr.mxu0 0.0
        %763 = vmatpush1.msra.mxu0 0.0
        %764 = vmatprep.subr.mxu0 0.0
        %765 = vmatpush1.msra.mxu0 0.0
        %766 = vmatprep.subr.mxu0 0.0
        %767 = vmatpush1.msra.mxu0 0.0
        %768 = vmatprep.subr.mxu0 0.0
        %769 = vmatpush1.msra.mxu0 0.0
        %770 = vmatprep.subr.mxu0 0.0
        %771 = vmatpush1.msra.mxu0 0.0
        %772 = vmatprep.subr.mxu0 0.0
        %773 = vmatpush1.msra.mxu0 0.0
        %774 = vmatprep.subr.mxu0 0.0
        %775 = vmatpush1.msra.mxu0 0.0
        %776 = vmatprep.subr.mxu0 0.0
        %777 = vmatpush1.msra.mxu0 0.0
        %778 = vmatprep.subr.mxu0 0.0
        %779 = vmatpush1.msra.mxu0 0.0
        %780 = vmatprep.subr.mxu0 0.0
        %781 = vmatpush1.msra.mxu0 0.0
        %782 = vmatprep.subr.mxu0 0.0
        %783 = vmatpush1.msra.mxu0 0.0
        %784 = vmatprep.subr.mxu0 0.0
        %785 = vmatpush1.msra.mxu0 0.0
        %786 = vmatprep.mubr.f32.mxu0 0.0
        %787 = vmatmul.mubr.f32.gmra.mrb[0].mxu0 %v718
        %v788 = vpop.f32.mrb[0].mxu0
        %v789 = vadd.f32 0.0, %v788
        %v790 = vpop.f32.mrb[0].mxu0
        %791 = vdwg.mxu0
        %v793 = vsel %vm566, %v330, 0
        %795 = vmatprep.subr.mxu0 0.0
        %796 = vmatpush1.msra.mxu0 %v720
        %797 = vmatprep.subr.mxu0 0.0
        %798 = vmatpush1.msra.mxu0 0.0
        %799 = vmatprep.subr.mxu0 0.0
        %800 = vmatpush1.msra.mxu0 0.0
        %801 = vmatprep.subr.mxu0 0.0
        %802 = vmatpush1.msra.mxu0 0.0
        %803 = vmatprep.subr.mxu0 0.0
        %804 = vmatpush1.msra.mxu0 0.0
        %805 = vmatprep.subr.mxu0 0.0
        %806 = vmatpush1.msra.mxu0 0.0
        %807 = vmatprep.subr.mxu0 0.0
        %808 = vmatpush1.msra.mxu0 0.0
        %809 = vmatprep.subr.mxu0 0.0
        %810 = vmatpush1.msra.mxu0 0.0
        %811 = vmatprep.subr.mxu0 0.0
        %812 = vmatpush1.msra.mxu0 0.0
        %813 = vmatprep.subr.mxu0 0.0
        %814 = vmatpush1.msra.mxu0 0.0
        %815 = vmatprep.subr.mxu0 0.0
        %816 = vmatpush1.msra.mxu0 0.0
        %817 = vmatprep.subr.mxu0 0.0
        %818 = vmatpush1.msra.mxu0 0.0
        %819 = vmatprep.subr.mxu0 0.0
        %820 = vmatpush1.msra.mxu0 0.0
        %821 = vmatprep.subr.mxu0 0.0
        %822 = vmatpush1.msra.mxu0 0.0
        %823 = vmatprep.subr.mxu0 0.0
        %824 = vmatpush1.msra.mxu0 0.0
        %825 = vmatprep.subr.mxu0 0.0
        %826 = vmatpush1.msra.mxu0 0.0
        %827 = vmatprep.subr.mxu0 0.0
        %828 = vmatpush1.msra.mxu0 0.0
        %829 = vmatprep.subr.mxu0 0.0
        %830 = vmatpush1.msra.mxu0 0.0
        %831 = vmatprep.subr.mxu0 0.0
        %832 = vmatpush1.msra.mxu0 0.0
        %833 = vmatprep.subr.mxu0 0.0
        %834 = vmatpush1.msra.mxu0 0.0
        %835 = vmatprep.subr.mxu0 0.0
        %836 = vmatpush1.msra.mxu0 0.0
        %837 = vmatprep.subr.mxu0 0.0
        %838 = vmatpush1.msra.mxu0 0.0
        %839 = vmatprep.subr.mxu0 0.0
        %840 = vmatpush1.msra.mxu0 0.0
        %841 = vmatprep.subr.mxu0 0.0
        %842 = vmatpush1.msra.mxu0 0.0
        %843 = vmatprep.subr.mxu0 0.0
        %844 = vmatpush1.msra.mxu0 0.0
        %845 = vmatprep.subr.mxu0 0.0
        %846 = vmatpush1.msra.mxu0 0.0
        %847 = vmatprep.subr.mxu0 0.0
        %848 = vmatpush1.msra.mxu0 0.0
        %849 = vmatprep.subr.mxu0 0.0
        %850 = vmatpush1.msra.mxu0 0.0
        %851 = vmatprep.subr.mxu0 0.0
        %852 = vmatpush1.msra.mxu0 0.0
        %853 = vmatprep.subr.mxu0 0.0
        %854 = vmatpush1.msra.mxu0 0.0
        %855 = vmatprep.subr.mxu0 0.0
        %856 = vmatpush1.msra.mxu0 0.0
        %857 = vmatprep.subr.mxu0 0.0
        %858 = vmatpush1.msra.mxu0 0.0
        %859 = vmatprep.mubr.f32.mxu0 0.0
        %860 = vmatmul.mubr.f32.gmra.mrb[0].mxu0 %v793
        %v861 = vpop.f32.mrb[0].mxu0
        %v862 = vadd.f32 0.0, %v861
        %v863 = vpop.f32.mrb[0].mxu0
        %864 = vdwg.mxu0
        %v865 = vmul.f32 %v641, %v641
        %v866 = vmul.f32 %v714, %v714
        %v867 = vadd.f32 %v865, %v866
        %v868 = vmul.f32 %v789, %v789
        %v869 = vadd.f32 %v867, %v868
        %v870 = vmul.f32 %v862, %v862
        %v871 = vadd.f32 %v869, %v870
        %vm872 = vcmask 27648
        %873 = vst.msk [vmem:[%s313] sm:$0xf] %vm872, %v871
        %s874 = sand.u32 %s208, 1
        %s875 = scalar_lea.sflag [#allocation3], %s874
        %s876 = sand.u32 %s208, 1
        %s877 = smul.addr %s876, 4
        %s878 = scalar_lea.vmem [#allocation2], %s877
        // Predicated region
        $region53: #{tpu_custom_call.1} parent=51 // pred_check
          %p879 = pneg %p218
        $region54: #{tpu_custom_call.1} parent=51 // pred_check_branch
          %881 = sbr.rel (%p879) target = $region56
        $region55: #{tpu_custom_call.1} parent=51 // pred_region
          %s883 = ssub.s32 64, 64
          %884 = vsyncadd %s875, %s883
          %s885 = smul.addr %s22, 64
          %s886 = scalar_lea.hbm %s8, %s885
          %s888 = sshll.u32 %s878, 4
          %s889 = int_to_ptr.vmem [resolvable:$true] %s888
          %891 = dma.vmem_to_hbm [thread:$0]  %s889, 64, %s886, %s875
        $region56: #{tpu_custom_call.1} parent=51 // pred_fallthru
          _
      $region52: #{tpu_custom_call.1} parent=5 // pred_fallthru
        _
      %p892 = scmp.le.s32.totalorder 2, %s17
      // Predicated region
      $region57: #{tpu_custom_call.1} parent=5 // pred_check
        %p893 = pneg %p892
      $region58: #{tpu_custom_call.1} parent=5 // pred_check_branch
        %895 = sbr.rel (%p893) target = $region60
      $region59: #{tpu_custom_call.1} parent=5 // pred_region
        %s896 = ssub.s32 %s17, 2
        // Predicated region
        $region61: #{tpu_custom_call.1} parent=59 // pred_check
          %p897 = pneg %p224
        $region62: #{tpu_custom_call.1} parent=59 // pred_check_branch
          %899 = sbr.rel (%p897) target = $region64
        $region63: #{tpu_custom_call.1} parent=59 // pred_region
          %s900 = sand.u32 %s209, 1
          %s901 = scalar_lea.sflag [#allocation3], %s900
          %s902 = sand.u32 %s209, 1
          %s903 = smul.addr %s902, 4
          %s904 = scalar_lea.vmem [#allocation2], %s903
          %905 = dma.done %s901, 64
        $region64: #{tpu_custom_call.1} parent=59 // pred_fallthru
          _
      $region60: #{tpu_custom_call.1} parent=5 // pred_fallthru
        _
    $region6: #{tpu_custom_call.1} parent=1 // loop_footer
      %s21 = sadd.s32 1, %s17
    $region7: #{tpu_custom_call.1} parent=1 // loop_footer_branch
      %16 = sbr.rel target = $region3
    $region8: #{tpu_custom_call.1} parent=1 // loop_exit
      _
    %906 = vsyncpa [#allocation3], 1
    %s907 = scalar_lea.sflag [#allocation3], 1
    %908 = vsyncpa %s907, 1

</llo_original>
